<compile_context>
chip_gen: v7x
topology: tpu7x:2x2x1
jax: 0.10.0
libtpu: 0.0.40
codegen_flags: <defaults>
</compile_context>

<pallas_src>
import jax
import jax.numpy as jnp
from jax.experimental import pallas as pl
from jax.experimental.pallas import tpu as pltpu
from functools import partial


# ----------------------------------------------------------------------------
# Kernel
# ----------------------------------------------------------------------------
def mha_kernel(x_ref, w_ref, b_ref, wo_ref, bo_ref, out_ref, *,
               num_heads, head_dim, bblk, sl):
    """One block of bblk batch elements: (rows, fd_q+fd_kv) -> (rows, op)."""
    embed_dim = num_heads * head_dim
    rows = bblk * sl

    # Fused Q/KV projection (scale already folded into the Q columns/bias).
    # bf16 MXU inputs, f32 accumulation, single f32 bias add.
    qkv = jnp.dot(x_ref[...], w_ref[...],
                  preferred_element_type=jnp.float32) + b_ref[...]

    q = qkv[:, :embed_dim]
    k = qkv[:, embed_dim:2 * embed_dim]
    v = qkv[:, 2 * embed_dim:]

    # Cast to bf16 once (not per head) and split rows -> (bblk, sl).
    q3 = q.astype(jnp.bfloat16).reshape(bblk, sl, embed_dim)
    k3 = k.astype(jnp.bfloat16).reshape(bblk, sl, embed_dim)
    v3 = v.astype(jnp.bfloat16).reshape(bblk, sl, embed_dim)

    # TODO(synk): a single einsum batched over the fused (bblk, num_heads) axis
    # would cut issue count further, but dot_general with two batch dims (or an
    # extra in-kernel sublane<->lane transpose) is riskier to lower; keep the
    # short unrolled head loop with every cast/scale hoisted out of it.
    head_outs = []
    for h in range(num_heads):
        hs = slice(h * head_dim, (h + 1) * head_dim)
        qh, kh, vh = q3[:, :, hs], k3[:, :, hs], v3[:, :, hs]

        s = jnp.einsum('bqd,bkd->bqk', qh, kh,
                       preferred_element_type=jnp.float32)      # f32 scores
        s = s - jnp.max(s, axis=-1, keepdims=True)               # f32 softmax
        p = jnp.exp(s)
        p = p * pl.reciprocal(jnp.sum(p, axis=-1, keepdims=True), approx=True)

        head_outs.append(
            jnp.einsum('bqk,bkd->bqd', p.astype(jnp.bfloat16), vh,
                       preferred_element_type=jnp.float32))      # (bblk, sl, hd)

    # Single lane-axis concat (E fits one lane group) -> one K=E out-proj matmul.
    attn = jnp.concatenate(head_outs, axis=-1).reshape(rows, embed_dim)
    out = jnp.dot(attn.astype(jnp.bfloat16), wo_ref[...],
                  preferred_element_type=jnp.float32) + bo_ref[...]
    out_ref[...] = out.astype(out_ref.dtype)   # lane-dense, full-width bf16 store


# ----------------------------------------------------------------------------
# Tiling / VMEM sizing helpers
# ----------------------------------------------------------------------------
def _vmem_budget():
    """VMEM budget (bytes) from the actual chip; conservative v7x fallback."""
    try:
        cap = int(pltpu.get_tpu_info().vmem_capacity_bytes)
    except Exception:
        cap = 64 * 1024 * 1024            # v7x per-core capacity (smallest gen)
    # Leave half for the compiler / surrounding XLA program.
    return max(16 * 1024 * 1024, min(cap // 2, 64 * 1024 * 1024))


def _bytes_per_row(fd2, op, embed_dim, sl):
    """Per-row VMEM footprint of one grid step (pipelined I/O + f32 temps)."""
    return (2 * 2 * fd2                    # bf16 fused input, double-buffered
            + 2 * 2 * op                   # bf16 padded output, double-buffered
            + 4 * 4 * 3 * embed_dim        # qkv + q/k/v f32/bf16 temporaries
            + 4 * 3 * sl                   # per-head scores / probs
            + 4 * embed_dim)               # concatenated head outputs


def _resident_bytes(fd2, op, embed_dim):
    return (2 * (fd2 * 3 * embed_dim + embed_dim * op)   # bf16 weights
            + 4 * (3 * embed_dim + op))                  # f32 biases


def _row_cap(fd2, op, embed_dim, sl, vmem_budget):
    usable = vmem_budget - _resident_bytes(fd2, op, embed_dim) - (2 << 20)
    cap = max(8, usable // _bytes_per_row(fd2, op, embed_dim, sl))
    return int(min(1024, (cap // 8) * 8))


def _vmem_limit(rows, fd2, op, embed_dim, sl, vmem_budget):
    need = rows * _bytes_per_row(fd2, op, embed_dim, sl) \
        + _resident_bytes(fd2, op, embed_dim)
    # 2x safety for compiler temporaries, floored at the v5e scoped default.
    return int(max(16 * 1024 * 1024, min(2 * need + (2 << 20), vmem_budget)))


def _pick_bblk(B, sl, *, max_rows):
    """Batch block size.

    Hard constraints: divides B; rows = bblk*sl multiple of 16 whenever the
    grid has >1 step (bf16 sublane packing + (8,128) rule); rows <= max_rows.
    Preferences: >=2 grid steps (keeps both v7x TensorCores busy), then >=4
    steps while rows >= 256 (real double-buffering), then the largest rows.
    Falls back to a single full-array step when nothing else is legal.
    """
    best_d, best_score = B, None
    for d in range(1, B + 1):
        if B % d:
            continue
        rows, steps = d * sl, B // d
        if steps > 1 and rows % 16:
            continue
        if rows > max_rows and d != 1:
            continue
        score = (steps >= 2, steps >= 4 and rows >= 256, rows)
        if best_score is None or score > best_score:
            best_d, best_score = d, score
    return best_d


# ----------------------------------------------------------------------------
# Wrapper
# ----------------------------------------------------------------------------
def multihead_attention(query, keyvalue, params, num_heads):
    """query: (bs, na, sl, query_dim); keyvalue: (bs, na, sl, kv_dim).
    Returns (bs, na, sl, output_dim) in query.dtype."""
    bs, na, sl, fd_q = query.shape
    fd_kv = keyvalue.shape[-1]
    B = bs * na
    wq, bq, wkv, bkv, wo, bo = params
    embed_dim = wq.shape[1]
    output_dim = wo.shape[1]
    head_dim = embed_dim // num_heads
    scale = 1.0 / float(head_dim) ** 0.5

    fd2 = fd_q + fd_kv
    op = ((output_dim + 127) // 128) * 128     # lane-dense padded output width

    # ---- one-time parameter prep (tiny, constant-foldable) ------------------
    # Fused projection weight: blockdiag(wq*scale, wkv) so a single matmul on
    # [q | kv] yields [Q | K | V] with the attention scale pre-applied to Q.
    w_fused = jnp.zeros((fd2, 3 * embed_dim), jnp.float32)
    w_fused = w_fused.at[:fd_q, :embed_dim].set(wq.astype(jnp.float32) * scale)
    w_fused = w_fused.at[fd_q:, embed_dim:].set(wkv.astype(jnp.float32))
    b_fused = jnp.concatenate([bq.astype(jnp.float32) * scale,
                               bkv.astype(jnp.float32)]).reshape(1, -1)

    wo_pad = jnp.zeros((embed_dim, op), jnp.float32)
    wo_pad = wo_pad.at[:, :output_dim].set(wo.astype(jnp.float32))
    bo_pad = jnp.zeros((1, op), jnp.float32).at[0, :output_dim].set(
        bo.astype(jnp.float32))

    w_fused_b = w_fused.astype(jnp.bfloat16)
    wo_b = wo_pad.astype(jnp.bfloat16)

    # ---- streamed input: bf16 in the wrapper (only per-step DMA'd operand) --
    x2 = jnp.concatenate(
        [query.reshape(B * sl, fd_q), keyvalue.reshape(B * sl, fd_kv)],
        axis=-1).astype(jnp.bfloat16)

    # ---- tiling --------------------------------------------------------------
    vmem_budget = _vmem_budget()
    row_cap = _row_cap(fd2, op, embed_dim, sl, vmem_budget)
    bblk = _pick_bblk(B, sl, max_rows=row_cap)
    rows = bblk * sl
    grid = (B // bblk,)
    vmem_limit = _vmem_limit(rows, fd2, op, embed_dim, sl, vmem_budget)

    full = lambda arr: pl.BlockSpec(arr.shape, lambda b: (0, 0))

    out = pl.pallas_call(
        partial(mha_kernel, num_heads=num_heads, head_dim=head_dim,
                bblk=bblk, sl=sl),
        out_shape=jax.ShapeDtypeStruct((B * sl, op), jnp.bfloat16),
        grid=grid,
        in_specs=[
            pl.BlockSpec((rows, fd2), lambda b: (b, 0)),   # streamed [q | kv]
            full(w_fused_b), full(b_fused), full(wo_b), full(bo_pad),
        ],
        out_specs=pl.BlockSpec((rows, op), lambda b: (b, 0)),
        compiler_params=pltpu.CompilerParams(
            dimension_semantics=("parallel",),
            vmem_limit_bytes=vmem_limit),
    )(x2, w_fused_b, b_fused, wo_b, bo_pad)

    # TODO(synk): this slice materializes a second (half-size, bf16) copy in
    # HBM; a consumer that tolerates the padded bf16 buffer could skip it.
    out = out[:, :output_dim].astype(query.dtype)
    return out.reshape(bs, na, sl, output_dim)


# ----------------------------------------------------------------------------
# Pure-JAX f32 reference (matches the PyTorch forward exactly)
# ----------------------------------------------------------------------------
def reference(query, keyvalue, params, num_heads):
    bs, na, sl, fd = query.shape
    wq, bq, wkv, bkv, wo, bo = params
    embed_dim = wq.shape[1]
    head_dim = embed_dim // num_heads
    q = query.reshape(bs * na, sl, fd) @ wq + bq
    kv = keyvalue.reshape(bs * na, sl, keyvalue.shape[-1]) @ wkv + bkv
    k, v = kv[..., :embed_dim], kv[..., embed_dim:]

    def split(x):
        return x.reshape(bs * na, sl, num_heads, head_dim).transpose(0, 2, 1, 3)

    Q, K, V = split(q), split(k), split(v)
    scores = jnp.einsum('bhqd,bhkd->bhqk', Q, K) / (head_dim ** 0.5)
    w = jax.nn.softmax(scores, axis=-1)
    wv = jnp.einsum('bhqk,bhkd->bhqd', w, V)
    wv = wv.transpose(0, 2, 1, 3).reshape(bs * na, sl, embed_dim)
    out = wv @ wo + bo
    return out.reshape(bs, na, sl, -1)


if __name__ == "__main__":
    # Small shapes consistent with the module's forward.
    bs, na, sl = 2, 2, 8
    query_dim = kv_dim = 16        # forward implies query_dim == kv_dim
    embed_dim = 32
    num_heads = 4
    output_dim = 16

    key = jax.random.PRNGKey(0)
    ks = jax.random.split(key, 8)

    query = jax.random.normal(ks[0], (bs, na, sl, query_dim), dtype=jnp.float32)
    keyvalue = jax.random.normal(ks[1], (bs, na, sl, kv_dim), dtype=jnp.float32)

    # Parameters stored as (in, out), i.e. nn.Linear.weight.T
    wq = jax.random.normal(ks[2], (query_dim, embed_dim), dtype=jnp.float32) * 0.1
    bq = jax.random.normal(ks[3], (embed_dim,), dtype=jnp.float32) * 0.1
    wkv = jax.random.normal(ks[4], (kv_dim, embed_dim * 2), dtype=jnp.float32) * 0.1
    bkv = jax.random.normal(ks[5], (embed_dim * 2,), dtype=jnp.float32) * 0.1
    wo = jax.random.normal(ks[6], (embed_dim, output_dim), dtype=jnp.float32) * 0.1
    bo = jax.random.normal(ks[7], (output_dim,), dtype=jnp.float32) * 0.1
    params = (wq, bq, wkv, bkv, wo, bo)

    out = multihead_attention(query, keyvalue, params, num_heads)
    out = jax.block_until_ready(out)

    ref = reference(query, keyvalue, params, num_heads)
    assert out.shape == (bs, na, sl, output_dim)
    # bf16 MXU inputs / bf16 output store with f32 accumulation and an
    # approximate softmax reciprocal -> compare at bf16-appropriate tolerance.
    assert jnp.allclose(out, ref, atol=3e-2, rtol=3e-2), \
        f"max err {jnp.max(jnp.abs(out - ref))}"

    print("KERNEL_OK")
</pallas_src>

<mosaic_0001>
module attributes {stable_mosaic.version = 11 : i64} {
  func.func @mha_kernel(%arg0: i32, %arg1: memref<16x32xbf16, #tpu.memory_space<vmem>>, %arg2: memref<32x96xbf16, #tpu.memory_space<vmem>>, %arg3: memref<1x96xf32, #tpu.memory_space<vmem>>, %arg4: memref<32x128xbf16, #tpu.memory_space<vmem>>, %arg5: memref<1x128xf32, #tpu.memory_space<vmem>>, %arg6: memref<16x128xbf16, #tpu.memory_space<vmem>>) attributes {dimension_semantics = [#tpu.dimension_semantics<parallel>], iteration_bounds = array<i64: 2>, scalar_prefetch = 0 : i64, scratch_operands = 0 : i64, tpu.core_type = #tpu.core_type<tc>, window_params = [{transform_indices = @transform_0, window_bounds = array<i64: 16, 32>}, {pipeline_mode = #tpu.pipeline_mode<synchronous>, transform_indices = @transform_1, window_bounds = array<i64: 32, 96>}, {pipeline_mode = #tpu.pipeline_mode<synchronous>, transform_indices = @transform_2, window_bounds = array<i64: 1, 96>}, {pipeline_mode = #tpu.pipeline_mode<synchronous>, transform_indices = @transform_3, window_bounds = array<i64: 32, 128>}, {pipeline_mode = #tpu.pipeline_mode<synchronous>, transform_indices = @transform_4, window_bounds = array<i64: 1, 128>}, {transform_indices = @transform_5, window_bounds = array<i64: 16, 128>}]} {
    %c0 = arith.constant 0 : index
    %c0_0 = arith.constant 0 : index
    %0 = vector.load %arg1[%c0, %c0_0] : memref<16x32xbf16, #tpu.memory_space<vmem>>, vector<16x32xbf16>
    %c0_1 = arith.constant 0 : index
    %c0_2 = arith.constant 0 : index
    %1 = vector.load %arg2[%c0_1, %c0_2] : memref<32x96xbf16, #tpu.memory_space<vmem>>, vector<32x96xbf16>
    %cst = arith.constant dense<0.000000e+00> : vector<16x96xf32>
    %2 = tpu.matmul %0, %1, %cst {dimension_numbers = #tpu.dot_dimension_numbers<[1], [0], [0], [1], [0, 0, 1, 1], [], []>} : vector<16x32xbf16>, vector<32x96xbf16>, vector<16x96xf32> -> vector<16x96xf32>
    %c0_3 = arith.constant 0 : index
    %c0_4 = arith.constant 0 : index
    %3 = vector.load %arg3[%c0_3, %c0_4] : memref<1x96xf32, #tpu.memory_space<vmem>>, vector<1x96xf32>
    %4 = vector.broadcast %3 : vector<1x96xf32> to vector<16x96xf32>
    %5 = arith.addf %2, %4 : vector<16x96xf32>
    %6 = vector.extract_strided_slice %5 {offsets = [0, 0], sizes = [16, 32], strides = [1, 1]} : vector<16x96xf32> to vector<16x32xf32>
    %7 = vector.extract_strided_slice %5 {offsets = [0, 32], sizes = [16, 32], strides = [1, 1]} : vector<16x96xf32> to vector<16x32xf32>
    %8 = vector.extract_strided_slice %5 {offsets = [0, 64], sizes = [16, 32], strides = [1, 1]} : vector<16x96xf32> to vector<16x32xf32>
    %9 = arith.truncf %6 : vector<16x32xf32> to vector<16x32xbf16>
    %10 = vector.shape_cast %9 : vector<16x32xbf16> to vector<2x8x32xbf16>
    %11 = arith.truncf %7 : vector<16x32xf32> to vector<16x32xbf16>
    %12 = vector.shape_cast %11 : vector<16x32xbf16> to vector<2x8x32xbf16>
    %13 = arith.truncf %8 : vector<16x32xf32> to vector<16x32xbf16>
    %14 = vector.shape_cast %13 : vector<16x32xbf16> to vector<2x8x32xbf16>
    %15 = vector.extract_strided_slice %10 {offsets = [0, 0, 0], sizes = [2, 8, 8], strides = [1, 1, 1]} : vector<2x8x32xbf16> to vector<2x8x8xbf16>
    %16 = vector.extract_strided_slice %12 {offsets = [0, 0, 0], sizes = [2, 8, 8], strides = [1, 1, 1]} : vector<2x8x32xbf16> to vector<2x8x8xbf16>
    %17 = vector.extract_strided_slice %14 {offsets = [0, 0, 0], sizes = [2, 8, 8], strides = [1, 1, 1]} : vector<2x8x32xbf16> to vector<2x8x8xbf16>
    "tpu.trace_start"() <{level = 10 : i32, message = "bqd,bkd->bqk"}> : () -> ()
    %cst_5 = arith.constant dense<0.000000e+00> : vector<2x8x8xf32>
    %18 = tpu.matmul %15, %16, %cst_5 {dimension_numbers = #tpu.dot_dimension_numbers<[2], [2], [1], [1], [0, 0, 0, 1, 1, 1], [0], [0]>} : vector<2x8x8xbf16>, vector<2x8x8xbf16>, vector<2x8x8xf32> -> vector<2x8x8xf32>
    "tpu.trace_stop"() : () -> ()
    %cst_6 = arith.constant dense<0xFF800000> : vector<2x8xf32>
    %19 = vector.multi_reduction <maximumf>, %18, %cst_6 [2] : vector<2x8x8xf32> to vector<2x8xf32>
    %20 = vector.shape_cast %19 : vector<2x8xf32> to vector<2x8x1xf32>
    %21 = vector.broadcast %20 : vector<2x8x1xf32> to vector<2x8x8xf32>
    %22 = arith.subf %18, %21 : vector<2x8x8xf32>
    %23 = math.exp %22 : vector<2x8x8xf32>
    %cst_7 = arith.constant dense<0.000000e+00> : vector<2x8xf32>
    %24 = vector.multi_reduction <add>, %23, %cst_7 [2] : vector<2x8x8xf32> to vector<2x8xf32>
    %25 = vector.shape_cast %24 : vector<2x8xf32> to vector<2x8x1xf32>
    %26 = tpu.reciprocal %25 {approx = true} : vector<2x8x1xf32> -> vector<2x8x1xf32>
    %27 = vector.broadcast %26 : vector<2x8x1xf32> to vector<2x8x8xf32>
    %28 = arith.mulf %23, %27 : vector<2x8x8xf32>
    %29 = arith.truncf %28 : vector<2x8x8xf32> to vector<2x8x8xbf16>
    "tpu.trace_start"() <{level = 10 : i32, message = "bqk,bkd->bqd"}> : () -> ()
    %cst_8 = arith.constant dense<0.000000e+00> : vector<2x8x8xf32>
    %30 = tpu.matmul %29, %17, %cst_8 {dimension_numbers = #tpu.dot_dimension_numbers<[2], [1], [1], [2], [0, 0, 0, 1, 1, 2], [0], [0]>} : vector<2x8x8xbf16>, vector<2x8x8xbf16>, vector<2x8x8xf32> -> vector<2x8x8xf32>
    "tpu.trace_stop"() : () -> ()
    %31 = vector.extract_strided_slice %10 {offsets = [0, 0, 8], sizes = [2, 8, 8], strides = [1, 1, 1]} : vector<2x8x32xbf16> to vector<2x8x8xbf16>
    %32 = vector.extract_strided_slice %12 {offsets = [0, 0, 8], sizes = [2, 8, 8], strides = [1, 1, 1]} : vector<2x8x32xbf16> to vector<2x8x8xbf16>
    %33 = vector.extract_strided_slice %14 {offsets = [0, 0, 8], sizes = [2, 8, 8], strides = [1, 1, 1]} : vector<2x8x32xbf16> to vector<2x8x8xbf16>
    "tpu.trace_start"() <{level = 10 : i32, message = "bqd,bkd->bqk"}> : () -> ()
    %cst_9 = arith.constant dense<0.000000e+00> : vector<2x8x8xf32>
    %34 = tpu.matmul %31, %32, %cst_9 {dimension_numbers = #tpu.dot_dimension_numbers<[2], [2], [1], [1], [0, 0, 0, 1, 1, 1], [0], [0]>} : vector<2x8x8xbf16>, vector<2x8x8xbf16>, vector<2x8x8xf32> -> vector<2x8x8xf32>
    "tpu.trace_stop"() : () -> ()
    %cst_10 = arith.constant dense<0xFF800000> : vector<2x8xf32>
    %35 = vector.multi_reduction <maximumf>, %34, %cst_10 [2] : vector<2x8x8xf32> to vector<2x8xf32>
    %36 = vector.shape_cast %35 : vector<2x8xf32> to vector<2x8x1xf32>
    %37 = vector.broadcast %36 : vector<2x8x1xf32> to vector<2x8x8xf32>
    %38 = arith.subf %34, %37 : vector<2x8x8xf32>
    %39 = math.exp %38 : vector<2x8x8xf32>
    %cst_11 = arith.constant dense<0.000000e+00> : vector<2x8xf32>
    %40 = vector.multi_reduction <add>, %39, %cst_11 [2] : vector<2x8x8xf32> to vector<2x8xf32>
    %41 = vector.shape_cast %40 : vector<2x8xf32> to vector<2x8x1xf32>
    %42 = tpu.reciprocal %41 {approx = true} : vector<2x8x1xf32> -> vector<2x8x1xf32>
    %43 = vector.broadcast %42 : vector<2x8x1xf32> to vector<2x8x8xf32>
    %44 = arith.mulf %39, %43 : vector<2x8x8xf32>
    %45 = arith.truncf %44 : vector<2x8x8xf32> to vector<2x8x8xbf16>
    "tpu.trace_start"() <{level = 10 : i32, message = "bqk,bkd->bqd"}> : () -> ()
    %cst_12 = arith.constant dense<0.000000e+00> : vector<2x8x8xf32>
    %46 = tpu.matmul %45, %33, %cst_12 {dimension_numbers = #tpu.dot_dimension_numbers<[2], [1], [1], [2], [0, 0, 0, 1, 1, 2], [0], [0]>} : vector<2x8x8xbf16>, vector<2x8x8xbf16>, vector<2x8x8xf32> -> vector<2x8x8xf32>
    "tpu.trace_stop"() : () -> ()
    %47 = vector.extract_strided_slice %10 {offsets = [0, 0, 16], sizes = [2, 8, 8], strides = [1, 1, 1]} : vector<2x8x32xbf16> to vector<2x8x8xbf16>
    %48 = vector.extract_strided_slice %12 {offsets = [0, 0, 16], sizes = [2, 8, 8], strides = [1, 1, 1]} : vector<2x8x32xbf16> to vector<2x8x8xbf16>
    %49 = vector.extract_strided_slice %14 {offsets = [0, 0, 16], sizes = [2, 8, 8], strides = [1, 1, 1]} : vector<2x8x32xbf16> to vector<2x8x8xbf16>
    "tpu.trace_start"() <{level = 10 : i32, message = "bqd,bkd->bqk"}> : () -> ()
    %cst_13 = arith.constant dense<0.000000e+00> : vector<2x8x8xf32>
    %50 = tpu.matmul %47, %48, %cst_13 {dimension_numbers = #tpu.dot_dimension_numbers<[2], [2], [1], [1], [0, 0, 0, 1, 1, 1], [0], [0]>} : vector<2x8x8xbf16>, vector<2x8x8xbf16>, vector<2x8x8xf32> -> vector<2x8x8xf32>
    "tpu.trace_stop"() : () -> ()
    %cst_14 = arith.constant dense<0xFF800000> : vector<2x8xf32>
    %51 = vector.multi_reduction <maximumf>, %50, %cst_14 [2] : vector<2x8x8xf32> to vector<2x8xf32>
    %52 = vector.shape_cast %51 : vector<2x8xf32> to vector<2x8x1xf32>
    %53 = vector.broadcast %52 : vector<2x8x1xf32> to vector<2x8x8xf32>
    %54 = arith.subf %50, %53 : vector<2x8x8xf32>
    %55 = math.exp %54 : vector<2x8x8xf32>
    %cst_15 = arith.constant dense<0.000000e+00> : vector<2x8xf32>
    %56 = vector.multi_reduction <add>, %55, %cst_15 [2] : vector<2x8x8xf32> to vector<2x8xf32>
    %57 = vector.shape_cast %56 : vector<2x8xf32> to vector<2x8x1xf32>
    %58 = tpu.reciprocal %57 {approx = true} : vector<2x8x1xf32> -> vector<2x8x1xf32>
    %59 = vector.broadcast %58 : vector<2x8x1xf32> to vector<2x8x8xf32>
    %60 = arith.mulf %55, %59 : vector<2x8x8xf32>
    %61 = arith.truncf %60 : vector<2x8x8xf32> to vector<2x8x8xbf16>
    "tpu.trace_start"() <{level = 10 : i32, message = "bqk,bkd->bqd"}> : () -> ()
    %cst_16 = arith.constant dense<0.000000e+00> : vector<2x8x8xf32>
    %62 = tpu.matmul %61, %49, %cst_16 {dimension_numbers = #tpu.dot_dimension_numbers<[2], [1], [1], [2], [0, 0, 0, 1, 1, 2], [0], [0]>} : vector<2x8x8xbf16>, vector<2x8x8xbf16>, vector<2x8x8xf32> -> vector<2x8x8xf32>
    "tpu.trace_stop"() : () -> ()
    %63 = vector.extract_strided_slice %10 {offsets = [0, 0, 24], sizes = [2, 8, 8], strides = [1, 1, 1]} : vector<2x8x32xbf16> to vector<2x8x8xbf16>
    %64 = vector.extract_strided_slice %12 {offsets = [0, 0, 24], sizes = [2, 8, 8], strides = [1, 1, 1]} : vector<2x8x32xbf16> to vector<2x8x8xbf16>
    %65 = vector.extract_strided_slice %14 {offsets = [0, 0, 24], sizes = [2, 8, 8], strides = [1, 1, 1]} : vector<2x8x32xbf16> to vector<2x8x8xbf16>
    "tpu.trace_start"() <{level = 10 : i32, message = "bqd,bkd->bqk"}> : () -> ()
    %cst_17 = arith.constant dense<0.000000e+00> : vector<2x8x8xf32>
    %66 = tpu.matmul %63, %64, %cst_17 {dimension_numbers = #tpu.dot_dimension_numbers<[2], [2], [1], [1], [0, 0, 0, 1, 1, 1], [0], [0]>} : vector<2x8x8xbf16>, vector<2x8x8xbf16>, vector<2x8x8xf32> -> vector<2x8x8xf32>
    "tpu.trace_stop"() : () -> ()
    %cst_18 = arith.constant dense<0xFF800000> : vector<2x8xf32>
    %67 = vector.multi_reduction <maximumf>, %66, %cst_18 [2] : vector<2x8x8xf32> to vector<2x8xf32>
    %68 = vector.shape_cast %67 : vector<2x8xf32> to vector<2x8x1xf32>
    %69 = vector.broadcast %68 : vector<2x8x1xf32> to vector<2x8x8xf32>
    %70 = arith.subf %66, %69 : vector<2x8x8xf32>
    %71 = math.exp %70 : vector<2x8x8xf32>
    %cst_19 = arith.constant dense<0.000000e+00> : vector<2x8xf32>
    %72 = vector.multi_reduction <add>, %71, %cst_19 [2] : vector<2x8x8xf32> to vector<2x8xf32>
    %73 = vector.shape_cast %72 : vector<2x8xf32> to vector<2x8x1xf32>
    %74 = tpu.reciprocal %73 {approx = true} : vector<2x8x1xf32> -> vector<2x8x1xf32>
    %75 = vector.broadcast %74 : vector<2x8x1xf32> to vector<2x8x8xf32>
    %76 = arith.mulf %71, %75 : vector<2x8x8xf32>
    %77 = arith.truncf %76 : vector<2x8x8xf32> to vector<2x8x8xbf16>
    "tpu.trace_start"() <{level = 10 : i32, message = "bqk,bkd->bqd"}> : () -> ()
    %cst_20 = arith.constant dense<0.000000e+00> : vector<2x8x8xf32>
    %78 = tpu.matmul %77, %65, %cst_20 {dimension_numbers = #tpu.dot_dimension_numbers<[2], [1], [1], [2], [0, 0, 0, 1, 1, 2], [0], [0]>} : vector<2x8x8xbf16>, vector<2x8x8xbf16>, vector<2x8x8xf32> -> vector<2x8x8xf32>
    "tpu.trace_stop"() : () -> ()
    %79 = tpu.concatenate %30, %46, %62, %78 in 2 : vector<2x8x8xf32>, vector<2x8x8xf32>, vector<2x8x8xf32>, vector<2x8x8xf32> -> vector<2x8x32xf32>
    %80 = vector.shape_cast %79 : vector<2x8x32xf32> to vector<16x32xf32>
    %81 = arith.truncf %80 : vector<16x32xf32> to vector<16x32xbf16>
    %c0_21 = arith.constant 0 : index
    %c0_22 = arith.constant 0 : index
    %82 = vector.load %arg4[%c0_21, %c0_22] : memref<32x128xbf16, #tpu.memory_space<vmem>>, vector<32x128xbf16>
    %cst_23 = arith.constant dense<0.000000e+00> : vector<16x128xf32>
    %83 = tpu.matmul %81, %82, %cst_23 {dimension_numbers = #tpu.dot_dimension_numbers<[1], [0], [0], [1], [0, 0, 1, 1], [], []>} : vector<16x32xbf16>, vector<32x128xbf16>, vector<16x128xf32> -> vector<16x128xf32>
    %c0_24 = arith.constant 0 : index
    %c0_25 = arith.constant 0 : index
    %84 = vector.load %arg5[%c0_24, %c0_25] : memref<1x128xf32, #tpu.memory_space<vmem>>, vector<1x128xf32>
    %85 = vector.broadcast %84 : vector<1x128xf32> to vector<16x128xf32>
    %86 = arith.addf %83, %85 : vector<16x128xf32>
    %87 = arith.truncf %86 : vector<16x128xf32> to vector<16x128xbf16>
    %c0_26 = arith.constant 0 : index
    %c0_27 = arith.constant 0 : index
    %88 = vector.load %arg6[%c0_26, %c0_27] : memref<16x128xbf16, #tpu.memory_space<vmem>>, vector<16x128xbf16>
    tpu.vector_store %arg6[%c0_26, %c0_27], %87 {strides = array<i32>} : memref<16x128xbf16, #tpu.memory_space<vmem>>, vector<16x128xbf16>,
    return
  }
  func.func @transform_0(%arg0: i32) -> (i32, i32) {
    %c0_i32 = arith.constant 0 : i32
    %c0_i32_0 = arith.constant 0 : i32
    return %arg0, %c0_i32 : i32, i32
  }
  func.func @transform_1(%arg0: i32) -> (i32, i32) {
    %c0_i32 = arith.constant 0 : i32
    %c0_i32_0 = arith.constant 0 : i32
    %c0_i32_1 = arith.constant 0 : i32
    return %c0_i32, %c0_i32_0 : i32, i32
  }
  func.func @transform_2(%arg0: i32) -> (i32, i32) {
    %c0_i32 = arith.constant 0 : i32
    %c0_i32_0 = arith.constant 0 : i32
    %c0_i32_1 = arith.constant 0 : i32
    return %c0_i32, %c0_i32_0 : i32, i32
  }
  func.func @transform_3(%arg0: i32) -> (i32, i32) {
    %c0_i32 = arith.constant 0 : i32
    %c0_i32_0 = arith.constant 0 : i32
    %c0_i32_1 = arith.constant 0 : i32
    return %c0_i32, %c0_i32_0 : i32, i32
  }
  func.func @transform_4(%arg0: i32) -> (i32, i32) {
    %c0_i32 = arith.constant 0 : i32
    %c0_i32_0 = arith.constant 0 : i32
    %c0_i32_1 = arith.constant 0 : i32
    return %c0_i32, %c0_i32_0 : i32, i32
  }
  func.func @transform_5(%arg0: i32) -> (i32, i32) {
    %c0_i32 = arith.constant 0 : i32
    %c0_i32_0 = arith.constant 0 : i32
    return %arg0, %c0_i32 : i32, i32
  }
}

</mosaic_0001>

<llo_original>
// kernel: tpu_custom_call.1
$region0: #{tpu_custom_call.1}
  #allocation0 [shape = 'u32[]', space=smem, size = 0x4, offset = 0x4, fixed_abs, tag = 'smem constant byte address 0x4 - core index']
  #allocation1 [shape = 'u32[144,128]{1,0:T(1,128)}', space=vmem, size = 0x12000, scoped, tag = 'internal scratch']
  %s0 = inlined_call_operand.hbm [shape: bf16[32,32], index: 0, kind: input, shape index: {}]
  %s1 = inlined_call_operand.hbm [shape: bf16[32,96], index: 1, kind: input, shape index: {}]
  %s2 = inlined_call_operand.vmem [shape: f32[1,96], index: 2, kind: input, shape index: {}]
  %s3 = inlined_call_operand.hbm [shape: bf16[32,128], index: 3, kind: input, shape index: {}]
  %s4 = inlined_call_operand.vmem [shape: f32[1,128], index: 4, kind: input, shape index: {}]
  %s5 = inlined_call_operand.hbm [shape: bf16[32,128], index: 5, kind: output, shape index: {}]
  %s6 = sld [smem:[#allocation0]]
  $region65: #{tpu_custom_call.1} parent=0
    _
  %s8 = ssub.s32 1, %s6
  %s9 = scalar_select 0, %s8, %s6
  $region1: #{tpu_custom_call.1} parent=0
    #allocation2 [shape = 'u8[8192]{0}', space=vmem, size = 0x2000, scoped, tag = 'input window, operand 0']
    #allocation3 [shape = 's32[2]{0}', space=sflag, size = 0x8, scoped, tag = 'scoped memory for tpu_custom_call.1']
    #allocation4 [shape = 's32[2]{0}', space=sflag, size = 0x8, scoped, tag = 'scoped memory for tpu_custom_call.1']
    #allocation5 [shape = 'u8[8192]{0}', space=vmem, size = 0x2000, scoped, tag = 'input window, operand 1, single buffered']
    #allocation6 [shape = 's32[1]{0}', space=sflag, size = 0x4, scoped, tag = 'scoped memory for tpu_custom_call.1']
    #allocation7 [shape = 'u8[8192]{0}', space=vmem, size = 0x2000, scoped, tag = 'input window, operand 3, single buffered']
    #allocation8 [shape = 'u8[8192]{0}', space=vmem, size = 0x2000, scoped, tag = 'output window, operand 0']
    %10 = vsyncpa [#allocation3], 0
    %s11 = scalar_lea.sflag [#allocation3], 1
    %12 = vsyncpa %s11, 0
    %13 = vsyncpa [#allocation6], 0
    %14 = vsyncpa [#allocation4], 0
    %s15 = scalar_lea.sflag [#allocation4], 1
    %16 = vsyncpa %s15, 0
    loop: start=0, step=1, limit=4
    $region2: #{tpu_custom_call.1} parent=1 // loop_pre_header
      _
    $region3: #{tpu_custom_call.1} parent=1 // loop_header
      %s18 = sphi 0, %s22
      %p19 = scmp.ge.s32.totalorder %s18, 4
      %s28 = sphi 0, %s30
      %s31 = sphi 0, %s28
      %s32 = sphi 0, %s31
      %s48 = sphi 0, %s32
      %s52 = sphi 0, %s52
      %s54 = sphi 0, %s52
      %s55 = sphi 0, %s54
      %s69 = sphi 0, %s55
      %s73 = sphi 0, %s73
      %s75 = sphi 0, %s73
      %s76 = sphi 0, %s75
      %s90 = sphi 0, %s76
      %s94 = sphi 0, %s94
      %s96 = sphi 0, %s94
      %s97 = sphi 0, %s96
      %s111 = sphi 0, %s97
      %s115 = sphi 0, %s115
      %s117 = sphi 0, %s115
      %s118 = sphi 0, %s117
      %s132 = sphi 0, %s118
      %s138 = sphi 0, %s140
      %s141 = sphi 0, %s138
      %s142 = sphi 0, %s141
      %s158 = sphi 0, %s142
    $region4: #{tpu_custom_call.1} parent=1 // loop_header_branch
      %21 = sbr.rel (%p19) target = $region8
    $region5: #{tpu_custom_call.1} parent=1 // loop_body
      %s23 = ssub.s32 %s18, 1
      %s24 = ssub.s32 %s18, 2
      %s25 = sadd.s32 %s18, 1
      %s26 = ssub.s32 %s18, %s25
      %p27 = scmp.eq.s32.totalorder %s26, 0
      %s29 = sadd.s32 %s28, 1
      %s30 = scalar_select %p27, %s28, %s29
      %p33 = pneg %p27
      %p34 = scmp.eq.s32.totalorder %s18, 1
      %p35 = por %p33, %p34
      %p36 = scmp.ne.s32.totalorder %s28, %s31
      %p37 = scmp.eq.s32.totalorder %s18, 0
      %p38 = por %p36, %p37
      %p39 = scmp.ne.s32.totalorder %s28, %s31
      %p40 = scmp.eq.s32.totalorder %s23, 1
      %p41 = por %p39, %p40
      %p42 = scmp.ne.s32.totalorder %s31, %s32
      %p43 = scmp.eq.s32.totalorder %s23, 0
      %p44 = por %p42, %p43
      %p45 = scmp.ne.s32.totalorder %s31, %s32
      %p46 = scmp.eq.s32.totalorder %s24, 1
      %p47 = por %p45, %p46
      %p49 = scmp.ne.s32.totalorder %s32, %s48
      %p50 = scmp.eq.s32.totalorder %s24, 0
      %p51 = por %p49, %p50
      %s53 = sadd.s32 %s52, 1
      %p56 = scmp.eq.s32.totalorder %s18, 1
      %p57 = scmp.ne.s32.totalorder %s52, %s54
      %p58 = scmp.eq.s32.totalorder %s18, 0
      %p59 = por %p57, %p58
      %p60 = scmp.ne.s32.totalorder %s52, %s54
      %p61 = scmp.eq.s32.totalorder %s23, 1
      %p62 = por %p60, %p61
      %p63 = scmp.ne.s32.totalorder %s54, %s55
      %p64 = scmp.eq.s32.totalorder %s23, 0
      %p65 = por %p63, %p64
      %p66 = scmp.ne.s32.totalorder %s54, %s55
      %p67 = scmp.eq.s32.totalorder %s24, 1
      %p68 = por %p66, %p67
      %p70 = scmp.ne.s32.totalorder %s55, %s69
      %p71 = scmp.eq.s32.totalorder %s24, 0
      %p72 = por %p70, %p71
      %s74 = sadd.s32 %s73, 1
      %p77 = scmp.eq.s32.totalorder %s18, 1
      %p78 = scmp.ne.s32.totalorder %s73, %s75
      %p79 = scmp.eq.s32.totalorder %s18, 0
      %p80 = por %p78, %p79
      %p81 = scmp.ne.s32.totalorder %s73, %s75
      %p82 = scmp.eq.s32.totalorder %s23, 1
      %p83 = por %p81, %p82
      %p84 = scmp.ne.s32.totalorder %s75, %s76
      %p85 = scmp.eq.s32.totalorder %s23, 0
      %p86 = por %p84, %p85
      %p87 = scmp.ne.s32.totalorder %s75, %s76
      %p88 = scmp.eq.s32.totalorder %s24, 1
      %p89 = por %p87, %p88
      %p91 = scmp.ne.s32.totalorder %s76, %s90
      %p92 = scmp.eq.s32.totalorder %s24, 0
      %p93 = por %p91, %p92
      %s95 = sadd.s32 %s94, 1
      %p98 = scmp.eq.s32.totalorder %s18, 1
      %p99 = scmp.ne.s32.totalorder %s94, %s96
      %p100 = scmp.eq.s32.totalorder %s18, 0
      %p101 = por %p99, %p100
      %p102 = scmp.ne.s32.totalorder %s94, %s96
      %p103 = scmp.eq.s32.totalorder %s23, 1
      %p104 = por %p102, %p103
      %p105 = scmp.ne.s32.totalorder %s96, %s97
      %p106 = scmp.eq.s32.totalorder %s23, 0
      %p107 = por %p105, %p106
      %p108 = scmp.ne.s32.totalorder %s96, %s97
      %p109 = scmp.eq.s32.totalorder %s24, 1
      %p110 = por %p108, %p109
      %p112 = scmp.ne.s32.totalorder %s97, %s111
      %p113 = scmp.eq.s32.totalorder %s24, 0
      %p114 = por %p112, %p113
      %s116 = sadd.s32 %s115, 1
      %p119 = scmp.eq.s32.totalorder %s18, 1
      %p120 = scmp.ne.s32.totalorder %s115, %s117
      %p121 = scmp.eq.s32.totalorder %s18, 0
      %p122 = por %p120, %p121
      %p123 = scmp.ne.s32.totalorder %s115, %s117
      %p124 = scmp.eq.s32.totalorder %s23, 1
      %p125 = por %p123, %p124
      %p126 = scmp.ne.s32.totalorder %s117, %s118
      %p127 = scmp.eq.s32.totalorder %s23, 0
      %p128 = por %p126, %p127
      %p129 = scmp.ne.s32.totalorder %s117, %s118
      %p130 = scmp.eq.s32.totalorder %s24, 1
      %p131 = por %p129, %p130
      %p133 = scmp.ne.s32.totalorder %s118, %s132
      %p134 = scmp.eq.s32.totalorder %s24, 0
      %p135 = por %p133, %p134
      %s136 = ssub.s32 %s18, %s25
      %p137 = scmp.eq.s32.totalorder %s136, 0
      %s139 = sadd.s32 %s138, 1
      %s140 = scalar_select %p137, %s138, %s139
      %p143 = pneg %p137
      %p144 = scmp.eq.s32.totalorder %s18, 1
      %p145 = por %p143, %p144
      %p146 = scmp.ne.s32.totalorder %s138, %s141
      %p147 = scmp.eq.s32.totalorder %s18, 0
      %p148 = por %p146, %p147
      %p149 = scmp.ne.s32.totalorder %s138, %s141
      %p150 = scmp.eq.s32.totalorder %s23, 1
      %p151 = por %p149, %p150
      %p152 = scmp.ne.s32.totalorder %s141, %s142
      %p153 = scmp.eq.s32.totalorder %s23, 0
      %p154 = por %p152, %p153
      %p155 = scmp.ne.s32.totalorder %s141, %s142
      %p156 = scmp.eq.s32.totalorder %s24, 1
      %p157 = por %p155, %p156
      %p159 = scmp.ne.s32.totalorder %s142, %s158
      %p160 = scmp.eq.s32.totalorder %s24, 0
      %p161 = por %p159, %p160
      %p162 = scmp.le.s32.totalorder 1, %s18
      %p163 = scmp.lt.s32.totalorder %s18, 3
      %p164 = pnand %p162, %p163
      %p165 = pneg %p164
      // Predicated region
      $region9: #{tpu_custom_call.1} parent=5 // pred_check
        _
      $region10: #{tpu_custom_call.1} parent=5 // pred_check_branch
        %167 = sbr.rel (%p164) target = $region12
      $region11: #{tpu_custom_call.1} parent=5 // pred_region
        %s168 = ssub.s32 %s18, 1
        // Predicated region
        $region13: #{tpu_custom_call.1} parent=11 // pred_check
          %p169 = pneg %p65
        $region14: #{tpu_custom_call.1} parent=11 // pred_check_branch
          %171 = sbr.rel (%p169) target = $region16
        $region15: #{tpu_custom_call.1} parent=11 // pred_region
          %s173 = ssub.s32 256, 256
          %174 = vsyncadd [#allocation6], %s173
          %s175 = sshll.u32 [#allocation5], 4
          %s176 = int_to_ptr.vmem [resolvable:$true] %s175
          %181 = dma.hbm_to_vmem [thread:$0]  %s1, 256, %s176, [#allocation6], 64, 64, 4
        $region16: #{tpu_custom_call.1} parent=11 // pred_fallthru
          _
        // Predicated region
        $region17: #{tpu_custom_call.1} parent=11 // pred_check
          %p182 = pneg %p86
        $region18: #{tpu_custom_call.1} parent=11 // pred_check_branch
          %184 = sbr.rel (%p182) target = $region20
        $region19: #{tpu_custom_call.1} parent=11 // pred_region
          _
        $region20: #{tpu_custom_call.1} parent=11 // pred_fallthru
          _
        // Predicated region
        $region21: #{tpu_custom_call.1} parent=11 // pred_check
          %p185 = pneg %p107
        $region22: #{tpu_custom_call.1} parent=11 // pred_check_branch
          %187 = sbr.rel (%p185) target = $region24
        $region23: #{tpu_custom_call.1} parent=11 // pred_region
          %s189 = ssub.s32 256, 256
          %190 = vsyncadd [#allocation6], %s189
          %s191 = sshll.u32 [#allocation7], 4
          %s192 = int_to_ptr.vmem [resolvable:$true] %s191
          %197 = dma.hbm_to_vmem [thread:$0]  %s3, 256, %s192, [#allocation6], 64, 64, 4
        $region24: #{tpu_custom_call.1} parent=11 // pred_fallthru
          _
        // Predicated region
        $region25: #{tpu_custom_call.1} parent=11 // pred_check
          %p198 = pneg %p128
        $region26: #{tpu_custom_call.1} parent=11 // pred_check_branch
          %200 = sbr.rel (%p198) target = $region28
        $region27: #{tpu_custom_call.1} parent=11 // pred_region
          _
        $region28: #{tpu_custom_call.1} parent=11 // pred_fallthru
          _
      $region12: #{tpu_custom_call.1} parent=5 // pred_fallthru
        _
      %p201 = scmp.lt.s32.totalorder %s18, 2
      // Predicated region
      $region29: #{tpu_custom_call.1} parent=5 // pred_check
        %p202 = pneg %p201
      $region30: #{tpu_custom_call.1} parent=5 // pred_check_branch
        %204 = sbr.rel (%p202) target = $region32
      $region31: #{tpu_custom_call.1} parent=5 // pred_region
        // Predicated region
        $region33: #{tpu_custom_call.1} parent=31 // pred_check
          %p205 = pneg %p38
        $region34: #{tpu_custom_call.1} parent=31 // pred_check_branch
          %207 = sbr.rel (%p205) target = $region36
        $region35: #{tpu_custom_call.1} parent=31 // pred_region
          %s208 = sand.u32 %s28, 1
          %s209 = scalar_lea.sflag [#allocation3], %s208
          %s210 = sand.u32 %s28, 1
          %s211 = smul.addr %s210, 8
          %s212 = scalar_lea.vmem [#allocation2], %s211
          %s213 = smul.u32 2, %s18
          %s215 = ssub.s32 128, 128
          %216 = vsyncadd %s209, %s215
          %s217 = smul.addr %s213, 64
          %s218 = scalar_lea.hbm %s0, %s217
          %s219 = sshll.u32 %s212, 4
          %s220 = int_to_ptr.vmem [resolvable:$true] %s219
          %225 = dma.hbm_to_vmem [thread:$0]  %s218, 128, %s220, %s209, 64, 64, 4
        $region36: #{tpu_custom_call.1} parent=31 // pred_fallthru
          _
      $region32: #{tpu_custom_call.1} parent=5 // pred_fallthru
        _
      %p226 = scmp.le.s32.totalorder 1, %s18
      %p227 = scmp.lt.s32.totalorder %s18, 3
      %p228 = pnand %p226, %p227
      %p229 = pneg %p228
      // Predicated region
      $region37: #{tpu_custom_call.1} parent=5 // pred_check
        _
      $region38: #{tpu_custom_call.1} parent=5 // pred_check_branch
        %231 = sbr.rel (%p228) target = $region40
      $region39: #{tpu_custom_call.1} parent=5 // pred_region
        %s232 = ssub.s32 %s18, 1
        %s233 = sand.u32 %s31, 1
        %s234 = scalar_lea.sflag [#allocation3], %s233
        %s235 = sand.u32 %s31, 1
        %s236 = smul.addr %s235, 8
        %s237 = scalar_lea.vmem [#allocation2], %s236
        // Predicated region
        $region41: #{tpu_custom_call.1} parent=39 // pred_check
          %p238 = pneg %p44
        $region42: #{tpu_custom_call.1} parent=39 // pred_check_branch
          %240 = sbr.rel (%p238) target = $region44
        $region43: #{tpu_custom_call.1} parent=39 // pred_region
          %241 = dma.done %s234, 128
        $region44: #{tpu_custom_call.1} parent=39 // pred_fallthru
          _
        // Predicated region
        $region45: #{tpu_custom_call.1} parent=39 // pred_check
          %p242 = pneg %p65
        $region46: #{tpu_custom_call.1} parent=39 // pred_check_branch
          %244 = sbr.rel (%p242) target = $region48
        $region47: #{tpu_custom_call.1} parent=39 // pred_region
          %245 = dma.done [#allocation6], 256
        $region48: #{tpu_custom_call.1} parent=39 // pred_fallthru
          _
        // Predicated region
        $region49: #{tpu_custom_call.1} parent=39 // pred_check
          %p246 = pneg %p107
        $region50: #{tpu_custom_call.1} parent=39 // pred_check_branch
          %248 = sbr.rel (%p246) target = $region52
        $region51: #{tpu_custom_call.1} parent=39 // pred_region
          %249 = dma.done [#allocation6], 256
        $region52: #{tpu_custom_call.1} parent=39 // pred_fallthru
          _
        %s250 = sand.u32 %s31, 1
        %s251 = scalar_lea.sflag [#allocation3], %s250
        %s252 = sand.u32 %s31, 1
        %s253 = smul.addr %s252, 8
        %s254 = scalar_lea.vmem [#allocation2], %s253
        %p255 = pneg %p44
        %p256 = pneg %p41
        %p257 = pneg %p65
        %p258 = pneg %p62
        %p259 = pneg %p86
        %p260 = pneg %p83
        %p261 = pneg %p107
        %p262 = pneg %p104
        %p263 = pneg %p128
        %p264 = pneg %p125
        %p265 = pneg %p154
        %p266 = pneg %p151
        %s267 = sand.u32 %s141, 1
        %s268 = scalar_lea.sflag [#allocation4], %s267
        %s269 = sand.u32 %s141, 1
        %s270 = smul.addr %s269, 8
        %s271 = scalar_lea.vmem [#allocation8], %s270
        %s272 = smul.u32 2, %s23
        %s273 = smul.u32 2, %s23
        %v275 = vld [vmem:[%s237] sm:$0xf]
        %v276 = vld [vmem:[%s237 + $0x4] sm:$0xf]
        %v277 = vld [vmem:[#allocation5] sm:$0xf]
        %v278 = vld [vmem:[#allocation5 + $0x4] sm:$0xf]
        %v279 = vld [vmem:[#allocation5 + $0x8] sm:$0xf]
        %v280 = vld [vmem:[#allocation5 + $0xc] sm:$0xf]
        %v281 = vld [vmem:[%s2] sm:$0x1]
        %v283 = vlaneseq
        %v284 = vshrl.u32 %v283, 7
        %v285 = vsub.s32 0, %v284
        %v286 = vrot.slane %v281, %v285
        %v290 = vunpack.c.l.b16 %v275
        %v291 = vunpack.c.l.b16 %v276
        %v292 = vpack.c.b16 %v291, %v290
        %v297 = vunpack.c.l.b16 %v277
        %v298 = vunpack.c.l.b16 %v278
        %v299 = vunpack.c.l.b16 %v279
        %v300 = vunpack.c.l.b16 %v280
        %v301 = vpack.c.b16 %v298, %v297
        %v302 = vpack.c.b16 %v300, %v299
        %vm305 = vcmask 261120
        %v307 = vsel %vm305, %v292, 0
        %309 = vmatprep.subr.bf16.mxu0 0
        %310 = vmatpush1.bf16.msra.mxu0 %v301
        %311 = vmatprep.subr.bf16.mxu0 0
        %312 = vmatpush1.bf16.msra.mxu0 %v302
        %313 = vmatprep.subr.bf16.mxu0 0
        %314 = vmatpush1.bf16.msra.mxu0 0
        %315 = vmatprep.subr.bf16.mxu0 0
        %316 = vmatpush1.bf16.msra.mxu0 0
        %317 = vmatprep.subr.bf16.mxu0 0
        %318 = vmatpush1.bf16.msra.mxu0 0
        %319 = vmatprep.subr.bf16.mxu0 0
        %320 = vmatpush1.bf16.msra.mxu0 0
        %321 = vmatprep.subr.bf16.mxu0 0
        %322 = vmatpush1.bf16.msra.mxu0 0
        %323 = vmatprep.subr.bf16.mxu0 0
        %324 = vmatpush1.bf16.msra.mxu0 0
        %325 = vmatprep.subr.bf16.mxu0 0
        %326 = vmatpush1.bf16.msra.mxu0 0
        %327 = vmatprep.subr.bf16.mxu0 0
        %328 = vmatpush1.bf16.msra.mxu0 0
        %329 = vmatprep.subr.bf16.mxu0 0
        %330 = vmatpush1.bf16.msra.mxu0 0
        %331 = vmatprep.subr.bf16.mxu0 0
        %332 = vmatpush1.bf16.msra.mxu0 0
        %333 = vmatprep.subr.bf16.mxu0 0
        %334 = vmatpush1.bf16.msra.mxu0 0
        %335 = vmatprep.subr.bf16.mxu0 0
        %336 = vmatpush1.bf16.msra.mxu0 0
        %337 = vmatprep.subr.bf16.mxu0 0
        %338 = vmatpush1.bf16.msra.mxu0 0
        %339 = vmatprep.subr.bf16.mxu0 0
        %340 = vmatpush1.bf16.msra.mxu0 0
        %341 = vmatprep.mubr.bf16.mxu0 0
        %342 = vmatmul.mubr.bf16.gmra.mrb[0].mxu0 %v307
        %v343 = vpop.f32.mrb[0].mxu0
        %v344 = vadd.f32 %v286, %v343
        %v345 = vpop.f32.mrb[0].mxu0
        %v346 = vpop.f32.mrb[0].mxu0
        %v347 = vadd.f32 %v286, %v346
        %v348 = vpop.f32.mrb[0].mxu0
        %349 = vdwg.mxu0
        %v350 = vpack.c.bf16 %v347, %v344
        %v352 = vunpack.c.l.b16 %v350
        %v353 = vunpack.c.h.b16 %v350
        %v354 = vpack.c.b16 %v352, %v352
        %v355 = vpack.c.b16 %v353, %v353
        %356 = vrot.lane.b32.xlu0 %v354, 96
        %v357 = vpop.permute.xlu0 %356
        %vm358 = vcmask 64512
        %v360 = vsel %vm358, %v354, 0
        %v363 = vsel %vm358, %v357, 0
        %365 = vmatprep.subr.bf16.mxu0 0
        %366 = vmatpush1.bf16.xpose.msra.mxu0 %v363
        %367 = vmatprep.subr.bf16.mxu0 0
        %368 = vmatpush1.bf16.xpose.msra.mxu0 0
        %369 = vmatprep.subr.bf16.mxu0 0
        %370 = vmatpush1.bf16.xpose.msra.mxu0 0
        %371 = vmatprep.subr.bf16.mxu0 0
        %372 = vmatpush1.bf16.xpose.msra.mxu0 0
        %373 = vmatprep.subr.bf16.mxu0 0
        %374 = vmatpush1.bf16.xpose.msra.mxu0 0
        %375 = vmatprep.subr.bf16.mxu0 0
        %376 = vmatpush1.bf16.xpose.msra.mxu0 0
        %377 = vmatprep.subr.bf16.mxu0 0
        %378 = vmatpush1.bf16.xpose.msra.mxu0 0
        %379 = vmatprep.subr.bf16.mxu0 0
        %380 = vmatpush1.bf16.xpose.msra.mxu0 0
        %381 = vmatprep.subr.bf16.mxu0 0
        %382 = vmatpush1.bf16.xpose.msra.mxu0 0
        %383 = vmatprep.subr.bf16.mxu0 0
        %384 = vmatpush1.bf16.xpose.msra.mxu0 0
        %385 = vmatprep.subr.bf16.mxu0 0
        %386 = vmatpush1.bf16.xpose.msra.mxu0 0
        %387 = vmatprep.subr.bf16.mxu0 0
        %388 = vmatpush1.bf16.xpose.msra.mxu0 0
        %389 = vmatprep.subr.bf16.mxu0 0
        %390 = vmatpush1.bf16.xpose.msra.mxu0 0
        %391 = vmatprep.subr.bf16.mxu0 0
        %392 = vmatpush1.bf16.xpose.msra.mxu0 0
        %393 = vmatprep.subr.bf16.mxu0 0
        %394 = vmatpush1.bf16.xpose.msra.mxu0 0
        %395 = vmatprep.subr.bf16.mxu0 0
        %396 = vmatpush1.bf16.xpose.msra.mxu0 0
        %397 = vmatprep.mubr.bf16.mxu0 0
        %398 = vmatmul.mubr.bf16.gmra.mrb[0].mxu0 %v360
        %v399 = vpop.f32.mrb[0].mxu0
        %v400 = vadd.f32 0.0, %v399
        %v401 = vpop.f32.mrb[0].mxu0
        %v402 = vpop.f32.mrb[0].mxu0
        %v403 = vpop.f32.mrb[0].mxu0
        %404 = vdwg.mxu0
        %405 = vrot.lane.b32.xlu0 %v355, 96
        %v406 = vpop.permute.xlu0 %405
        %v408 = vsel %vm358, %v355, 0
        %v411 = vsel %vm358, %v406, 0
        %413 = vmatprep.subr.bf16.mxu0 0
        %414 = vmatpush1.bf16.xpose.msra.mxu0 %v411
        %415 = vmatprep.subr.bf16.mxu0 0
        %416 = vmatpush1.bf16.xpose.msra.mxu0 0
        %417 = vmatprep.subr.bf16.mxu0 0
        %418 = vmatpush1.bf16.xpose.msra.mxu0 0
        %419 = vmatprep.subr.bf16.mxu0 0
        %420 = vmatpush1.bf16.xpose.msra.mxu0 0
        %421 = vmatprep.subr.bf16.mxu0 0
        %422 = vmatpush1.bf16.xpose.msra.mxu0 0
        %423 = vmatprep.subr.bf16.mxu0 0
        %424 = vmatpush1.bf16.xpose.msra.mxu0 0
        %425 = vmatprep.subr.bf16.mxu0 0
        %426 = vmatpush1.bf16.xpose.msra.mxu0 0
        %427 = vmatprep.subr.bf16.mxu0 0
        %428 = vmatpush1.bf16.xpose.msra.mxu0 0
        %429 = vmatprep.subr.bf16.mxu0 0
        %430 = vmatpush1.bf16.xpose.msra.mxu0 0
        %431 = vmatprep.subr.bf16.mxu0 0
        %432 = vmatpush1.bf16.xpose.msra.mxu0 0
        %433 = vmatprep.subr.bf16.mxu0 0
        %434 = vmatpush1.bf16.xpose.msra.mxu0 0
        %435 = vmatprep.subr.bf16.mxu0 0
        %436 = vmatpush1.bf16.xpose.msra.mxu0 0
        %437 = vmatprep.subr.bf16.mxu0 0
        %438 = vmatpush1.bf16.xpose.msra.mxu0 0
        %439 = vmatprep.subr.bf16.mxu0 0
        %440 = vmatpush1.bf16.xpose.msra.mxu0 0
        %441 = vmatprep.subr.bf16.mxu0 0
        %442 = vmatpush1.bf16.xpose.msra.mxu0 0
        %443 = vmatprep.subr.bf16.mxu0 0
        %444 = vmatpush1.bf16.xpose.msra.mxu0 0
        %445 = vmatprep.mubr.bf16.mxu0 0
        %446 = vmatmul.mubr.bf16.gmra.mrb[0].mxu0 %v408
        %v447 = vpop.f32.mrb[0].mxu0
        %v448 = vadd.f32 0.0, %v447
        %v449 = vpop.f32.mrb[0].mxu0
        %v450 = vpop.f32.mrb[0].mxu0
        %v451 = vpop.f32.mrb[0].mxu0
        %452 = vdwg.mxu0
        %v453 = vsel %vm358, %v400, -inf
        %454 = vmax.xlane.f32.xlu0 %v453
        %v455 = vpop.xlane.xlu0 %454
        %v456 = vsel %vm358, %v448, -inf
        %457 = vmax.xlane.f32.xlu0 %v456
        %v458 = vpop.xlane.xlu0 %457
        %v459 = vsub.f32 %v400, %v455
        %v460 = vsub.f32 %v448, %v458
        %v461 = vmul.f32 %v459, 1.442695
        %v462 = vpow.pop %v461
        %v463 = vmul.f32 %v460, 1.442695
        %v464 = vpow.pop %v463
        %v465 = vsel %vm358, %v462, 0.0
        %466 = vadd.xlane.f32.xlu0 %v465
        %v467 = vpop.xlane.xlu0 %466
        %v468 = vsel %vm358, %v464, 0.0
        %469 = vadd.xlane.f32.xlu0 %v468
        %v470 = vpop.xlane.xlu0 %469
        %v471 = vrcp.pop %v467
        %v472 = vrcp.pop %v470
        %v473 = vmul.f32 %v462, %v471
        %v474 = vmul.f32 %v464, %v472
        %v475 = vpack.c.bf16 %v473, %v473
        %v476 = vpack.c.bf16 %v474, %v474
        %477 = vrot.lane.b32.xlu0 %v354, 64
        %v478 = vpop.permute.xlu0 %477
        %v480 = vsel %vm358, %v475, 0
        %vm482 = vcmask 1043456
        %v484 = vsel %vm482, %v478, 0
        %486 = vmatprep.subr.bf16.mxu0 0
        %487 = vmatpush1.bf16.msra.mxu0 %v484
        %488 = vmatprep.subr.bf16.mxu0 0
        %489 = vmatpush1.bf16.msra.mxu0 0
        %490 = vmatprep.subr.bf16.mxu0 0
        %491 = vmatpush1.bf16.msra.mxu0 0
        %492 = vmatprep.subr.bf16.mxu0 0
        %493 = vmatpush1.bf16.msra.mxu0 0
        %494 = vmatprep.subr.bf16.mxu0 0
        %495 = vmatpush1.bf16.msra.mxu0 0
        %496 = vmatprep.subr.bf16.mxu0 0
        %497 = vmatpush1.bf16.msra.mxu0 0
        %498 = vmatprep.subr.bf16.mxu0 0
        %499 = vmatpush1.bf16.msra.mxu0 0
        %500 = vmatprep.subr.bf16.mxu0 0
        %501 = vmatpush1.bf16.msra.mxu0 0
        %502 = vmatprep.subr.bf16.mxu0 0
        %503 = vmatpush1.bf16.msra.mxu0 0
        %504 = vmatprep.subr.bf16.mxu0 0
        %505 = vmatpush1.bf16.msra.mxu0 0
        %506 = vmatprep.subr.bf16.mxu0 0
        %507 = vmatpush1.bf16.msra.mxu0 0
        %508 = vmatprep.subr.bf16.mxu0 0
        %509 = vmatpush1.bf16.msra.mxu0 0
        %510 = vmatprep.subr.bf16.mxu0 0
        %511 = vmatpush1.bf16.msra.mxu0 0
        %512 = vmatprep.subr.bf16.mxu0 0
        %513 = vmatpush1.bf16.msra.mxu0 0
        %514 = vmatprep.subr.bf16.mxu0 0
        %515 = vmatpush1.bf16.msra.mxu0 0
        %516 = vmatprep.subr.bf16.mxu0 0
        %517 = vmatpush1.bf16.msra.mxu0 0
        %518 = vmatprep.mubr.bf16.mxu0 0
        %519 = vmatmul.mubr.bf16.gmra.mrb[0].mxu0 %v480
        %v520 = vpop.f32.mrb[0].mxu0
        %v521 = vadd.f32 0.0, %v520
        %v522 = vpop.f32.mrb[0].mxu0
        %v523 = vpop.f32.mrb[0].mxu0
        %v524 = vpop.f32.mrb[0].mxu0
        %525 = vdwg.mxu0
        %526 = vrot.lane.b32.xlu0 %v355, 64
        %v527 = vpop.permute.xlu0 %526
        %v529 = vsel %vm358, %v476, 0
        %v532 = vsel %vm482, %v527, 0
        %534 = vmatprep.subr.bf16.mxu0 0
        %535 = vmatpush1.bf16.msra.mxu0 %v532
        %536 = vmatprep.subr.bf16.mxu0 0
        %537 = vmatpush1.bf16.msra.mxu0 0
        %538 = vmatprep.subr.bf16.mxu0 0
        %539 = vmatpush1.bf16.msra.mxu0 0
        %540 = vmatprep.subr.bf16.mxu0 0
        %541 = vmatpush1.bf16.msra.mxu0 0
        %542 = vmatprep.subr.bf16.mxu0 0
        %543 = vmatpush1.bf16.msra.mxu0 0
        %544 = vmatprep.subr.bf16.mxu0 0
        %545 = vmatpush1.bf16.msra.mxu0 0
        %546 = vmatprep.subr.bf16.mxu0 0
        %547 = vmatpush1.bf16.msra.mxu0 0
        %548 = vmatprep.subr.bf16.mxu0 0
        %549 = vmatpush1.bf16.msra.mxu0 0
        %550 = vmatprep.subr.bf16.mxu0 0
        %551 = vmatpush1.bf16.msra.mxu0 0
        %552 = vmatprep.subr.bf16.mxu0 0
        %553 = vmatpush1.bf16.msra.mxu0 0
        %554 = vmatprep.subr.bf16.mxu0 0
        %555 = vmatpush1.bf16.msra.mxu0 0
        %556 = vmatprep.subr.bf16.mxu0 0
        %557 = vmatpush1.bf16.msra.mxu0 0
        %558 = vmatprep.subr.bf16.mxu0 0
        %559 = vmatpush1.bf16.msra.mxu0 0
        %560 = vmatprep.subr.bf16.mxu0 0
        %561 = vmatpush1.bf16.msra.mxu0 0
        %562 = vmatprep.subr.bf16.mxu0 0
        %563 = vmatpush1.bf16.msra.mxu0 0
        %564 = vmatprep.subr.bf16.mxu0 0
        %565 = vmatpush1.bf16.msra.mxu0 0
        %566 = vmatprep.mubr.bf16.mxu0 0
        %567 = vmatmul.mubr.bf16.gmra.mrb[0].mxu0 %v529
        %v568 = vpop.f32.mrb[0].mxu0
        %v569 = vadd.f32 0.0, %v568
        %v570 = vpop.f32.mrb[0].mxu0
        %v571 = vpop.f32.mrb[0].mxu0
        %v572 = vpop.f32.mrb[0].mxu0
        %573 = vdwg.mxu0
        %574 = vrot.lane.b32.xlu0 %v354, 120
        %v575 = vpop.permute.xlu0 %574
        %576 = vrot.lane.b32.xlu0 %v354, 88
        %v577 = vpop.permute.xlu0 %576
        %v579 = vsel %vm358, %v575, 0
        %v582 = vsel %vm358, %v577, 0
        %584 = vmatprep.subr.bf16.mxu0 0
        %585 = vmatpush1.bf16.xpose.msra.mxu0 %v582
        %586 = vmatprep.subr.bf16.mxu0 0
        %587 = vmatpush1.bf16.xpose.msra.mxu0 0
        %588 = vmatprep.subr.bf16.mxu0 0
        %589 = vmatpush1.bf16.xpose.msra.mxu0 0
        %590 = vmatprep.subr.bf16.mxu0 0
        %591 = vmatpush1.bf16.xpose.msra.mxu0 0
        %592 = vmatprep.subr.bf16.mxu0 0
        %593 = vmatpush1.bf16.xpose.msra.mxu0 0
        %594 = vmatprep.subr.bf16.mxu0 0
        %595 = vmatpush1.bf16.xpose.msra.mxu0 0
        %596 = vmatprep.subr.bf16.mxu0 0
        %597 = vmatpush1.bf16.xpose.msra.mxu0 0
        %598 = vmatprep.subr.bf16.mxu0 0
        %599 = vmatpush1.bf16.xpose.msra.mxu0 0
        %600 = vmatprep.subr.bf16.mxu0 0
        %601 = vmatpush1.bf16.xpose.msra.mxu0 0
        %602 = vmatprep.subr.bf16.mxu0 0
        %603 = vmatpush1.bf16.xpose.msra.mxu0 0
        %604 = vmatprep.subr.bf16.mxu0 0
        %605 = vmatpush1.bf16.xpose.msra.mxu0 0
        %606 = vmatprep.subr.bf16.mxu0 0
        %607 = vmatpush1.bf16.xpose.msra.mxu0 0
        %608 = vmatprep.subr.bf16.mxu0 0
        %609 = vmatpush1.bf16.xpose.msra.mxu0 0
        %610 = vmatprep.subr.bf16.mxu0 0
        %611 = vmatpush1.bf16.xpose.msra.mxu0 0
        %612 = vmatprep.subr.bf16.mxu0 0
        %613 = vmatpush1.bf16.xpose.msra.mxu0 0
        %614 = vmatprep.subr.bf16.mxu0 0
        %615 = vmatpush1.bf16.xpose.msra.mxu0 0
        %616 = vmatprep.mubr.bf16.mxu0 0
        %617 = vmatmul.mubr.bf16.gmra.mrb[0].mxu0 %v579
        %v618 = vpop.f32.mrb[0].mxu0
        %v619 = vadd.f32 0.0, %v618
        %v620 = vpop.f32.mrb[0].mxu0
        %v621 = vpop.f32.mrb[0].mxu0
        %v622 = vpop.f32.mrb[0].mxu0
        %623 = vdwg.mxu0
        %624 = vrot.lane.b32.xlu0 %v355, 120
        %v625 = vpop.permute.xlu0 %624
        %626 = vrot.lane.b32.xlu0 %v355, 88
        %v627 = vpop.permute.xlu0 %626
        %v629 = vsel %vm358, %v625, 0
        %v632 = vsel %vm358, %v627, 0
        %634 = vmatprep.subr.bf16.mxu0 0
        %635 = vmatpush1.bf16.xpose.msra.mxu0 %v632
        %636 = vmatprep.subr.bf16.mxu0 0
        %637 = vmatpush1.bf16.xpose.msra.mxu0 0
        %638 = vmatprep.subr.bf16.mxu0 0
        %639 = vmatpush1.bf16.xpose.msra.mxu0 0
        %640 = vmatprep.subr.bf16.mxu0 0
        %641 = vmatpush1.bf16.xpose.msra.mxu0 0
        %642 = vmatprep.subr.bf16.mxu0 0
        %643 = vmatpush1.bf16.xpose.msra.mxu0 0
        %644 = vmatprep.subr.bf16.mxu0 0
        %645 = vmatpush1.bf16.xpose.msra.mxu0 0
        %646 = vmatprep.subr.bf16.mxu0 0
        %647 = vmatpush1.bf16.xpose.msra.mxu0 0
        %648 = vmatprep.subr.bf16.mxu0 0
        %649 = vmatpush1.bf16.xpose.msra.mxu0 0
        %650 = vmatprep.subr.bf16.mxu0 0
        %651 = vmatpush1.bf16.xpose.msra.mxu0 0
        %652 = vmatprep.subr.bf16.mxu0 0
        %653 = vmatpush1.bf16.xpose.msra.mxu0 0
        %654 = vmatprep.subr.bf16.mxu0 0
        %655 = vmatpush1.bf16.xpose.msra.mxu0 0
        %656 = vmatprep.subr.bf16.mxu0 0
        %657 = vmatpush1.bf16.xpose.msra.mxu0 0
        %658 = vmatprep.subr.bf16.mxu0 0
        %659 = vmatpush1.bf16.xpose.msra.mxu0 0
        %660 = vmatprep.subr.bf16.mxu0 0
        %661 = vmatpush1.bf16.xpose.msra.mxu0 0
        %662 = vmatprep.subr.bf16.mxu0 0
        %663 = vmatpush1.bf16.xpose.msra.mxu0 0
        %664 = vmatprep.subr.bf16.mxu0 0
        %665 = vmatpush1.bf16.xpose.msra.mxu0 0
        %666 = vmatprep.mubr.bf16.mxu0 0
        %667 = vmatmul.mubr.bf16.gmra.mrb[0].mxu0 %v629
        %v668 = vpop.f32.mrb[0].mxu0
        %v669 = vadd.f32 0.0, %v668
        %v670 = vpop.f32.mrb[0].mxu0
        %v671 = vpop.f32.mrb[0].mxu0
        %v672 = vpop.f32.mrb[0].mxu0
        %673 = vdwg.mxu0
        %v674 = vsel %vm358, %v619, -inf
        %675 = vmax.xlane.f32.xlu0 %v674
        %v676 = vpop.xlane.xlu0 %675
        %v677 = vsel %vm358, %v669, -inf
        %678 = vmax.xlane.f32.xlu0 %v677
        %v679 = vpop.xlane.xlu0 %678
        %v680 = vsub.f32 %v619, %v676
        %v681 = vsub.f32 %v669, %v679
        %v682 = vmul.f32 %v680, 1.442695
        %v683 = vpow.pop %v682
        %v684 = vmul.f32 %v681, 1.442695
        %v685 = vpow.pop %v684
        %v686 = vsel %vm358, %v683, 0.0
        %687 = vadd.xlane.f32.xlu0 %v686
        %v688 = vpop.xlane.xlu0 %687
        %v689 = vsel %vm358, %v685, 0.0
        %690 = vadd.xlane.f32.xlu0 %v689
        %v691 = vpop.xlane.xlu0 %690
        %v692 = vrcp.pop %v688
        %v693 = vrcp.pop %v691
        %v694 = vmul.f32 %v683, %v692
        %v695 = vmul.f32 %v685, %v693
        %v696 = vpack.c.bf16 %v694, %v694
        %v697 = vpack.c.bf16 %v695, %v695
        %698 = vrot.lane.b32.xlu0 %v354, 56
        %v699 = vpop.permute.xlu0 %698
        %v701 = vsel %vm358, %v696, 0
        %v704 = vsel %vm482, %v699, 0
        %706 = vmatprep.subr.bf16.mxu0 0
        %707 = vmatpush1.bf16.msra.mxu0 %v704
        %708 = vmatprep.subr.bf16.mxu0 0
        %709 = vmatpush1.bf16.msra.mxu0 0
        %710 = vmatprep.subr.bf16.mxu0 0
        %711 = vmatpush1.bf16.msra.mxu0 0
        %712 = vmatprep.subr.bf16.mxu0 0
        %713 = vmatpush1.bf16.msra.mxu0 0
        %714 = vmatprep.subr.bf16.mxu0 0
        %715 = vmatpush1.bf16.msra.mxu0 0
        %716 = vmatprep.subr.bf16.mxu0 0
        %717 = vmatpush1.bf16.msra.mxu0 0
        %718 = vmatprep.subr.bf16.mxu0 0
        %719 = vmatpush1.bf16.msra.mxu0 0
        %720 = vmatprep.subr.bf16.mxu0 0
        %721 = vmatpush1.bf16.msra.mxu0 0
        %722 = vmatprep.subr.bf16.mxu0 0
        %723 = vmatpush1.bf16.msra.mxu0 0
        %724 = vmatprep.subr.bf16.mxu0 0
        %725 = vmatpush1.bf16.msra.mxu0 0
        %726 = vmatprep.subr.bf16.mxu0 0
        %727 = vmatpush1.bf16.msra.mxu0 0
        %728 = vmatprep.subr.bf16.mxu0 0
        %729 = vmatpush1.bf16.msra.mxu0 0
        %730 = vmatprep.subr.bf16.mxu0 0
        %731 = vmatpush1.bf16.msra.mxu0 0
        %732 = vmatprep.subr.bf16.mxu0 0
        %733 = vmatpush1.bf16.msra.mxu0 0
        %734 = vmatprep.subr.bf16.mxu0 0
        %735 = vmatpush1.bf16.msra.mxu0 0
        %736 = vmatprep.subr.bf16.mxu0 0
        %737 = vmatpush1.bf16.msra.mxu0 0
        %738 = vmatprep.mubr.bf16.mxu0 0
        %739 = vmatmul.mubr.bf16.gmra.mrb[0].mxu0 %v701
        %v740 = vpop.f32.mrb[0].mxu0
        %v741 = vadd.f32 0.0, %v740
        %v742 = vpop.f32.mrb[0].mxu0
        %v743 = vpop.f32.mrb[0].mxu0
        %v744 = vpop.f32.mrb[0].mxu0
        %745 = vdwg.mxu0
        %746 = vrot.lane.b32.xlu0 %v355, 56
        %v747 = vpop.permute.xlu0 %746
        %v749 = vsel %vm358, %v697, 0
        %v752 = vsel %vm482, %v747, 0
        %754 = vmatprep.subr.bf16.mxu0 0
        %755 = vmatpush1.bf16.msra.mxu0 %v752
        %756 = vmatprep.subr.bf16.mxu0 0
        %757 = vmatpush1.bf16.msra.mxu0 0
        %758 = vmatprep.subr.bf16.mxu0 0
        %759 = vmatpush1.bf16.msra.mxu0 0
        %760 = vmatprep.subr.bf16.mxu0 0
        %761 = vmatpush1.bf16.msra.mxu0 0
        %762 = vmatprep.subr.bf16.mxu0 0
        %763 = vmatpush1.bf16.msra.mxu0 0
        %764 = vmatprep.subr.bf16.mxu0 0
        %765 = vmatpush1.bf16.msra.mxu0 0
        %766 = vmatprep.subr.bf16.mxu0 0
        %767 = vmatpush1.bf16.msra.mxu0 0
        %768 = vmatprep.subr.bf16.mxu0 0
        %769 = vmatpush1.bf16.msra.mxu0 0
        %770 = vmatprep.subr.bf16.mxu0 0
        %771 = vmatpush1.bf16.msra.mxu0 0
        %772 = vmatprep.subr.bf16.mxu0 0
        %773 = vmatpush1.bf16.msra.mxu0 0
        %774 = vmatprep.subr.bf16.mxu0 0
        %775 = vmatpush1.bf16.msra.mxu0 0
        %776 = vmatprep.subr.bf16.mxu0 0
        %777 = vmatpush1.bf16.msra.mxu0 0
        %778 = vmatprep.subr.bf16.mxu0 0
        %779 = vmatpush1.bf16.msra.mxu0 0
        %780 = vmatprep.subr.bf16.mxu0 0
        %781 = vmatpush1.bf16.msra.mxu0 0
        %782 = vmatprep.subr.bf16.mxu0 0
        %783 = vmatpush1.bf16.msra.mxu0 0
        %784 = vmatprep.subr.bf16.mxu0 0
        %785 = vmatpush1.bf16.msra.mxu0 0
        %786 = vmatprep.mubr.bf16.mxu0 0
        %787 = vmatmul.mubr.bf16.gmra.mrb[0].mxu0 %v749
        %v788 = vpop.f32.mrb[0].mxu0
        %v789 = vadd.f32 0.0, %v788
        %v790 = vpop.f32.mrb[0].mxu0
        %v791 = vpop.f32.mrb[0].mxu0
        %v792 = vpop.f32.mrb[0].mxu0
        %793 = vdwg.mxu0
        %794 = vrot.lane.b32.xlu0 %v354, 112
        %v795 = vpop.permute.xlu0 %794
        %796 = vrot.lane.b32.xlu0 %v354, 80
        %v797 = vpop.permute.xlu0 %796
        %v799 = vsel %vm358, %v795, 0
        %v802 = vsel %vm358, %v797, 0
        %804 = vmatprep.subr.bf16.mxu0 0
        %805 = vmatpush1.bf16.xpose.msra.mxu0 %v802
        %806 = vmatprep.subr.bf16.mxu0 0
        %807 = vmatpush1.bf16.xpose.msra.mxu0 0
        %808 = vmatprep.subr.bf16.mxu0 0
        %809 = vmatpush1.bf16.xpose.msra.mxu0 0
        %810 = vmatprep.subr.bf16.mxu0 0
        %811 = vmatpush1.bf16.xpose.msra.mxu0 0
        %812 = vmatprep.subr.bf16.mxu0 0
        %813 = vmatpush1.bf16.xpose.msra.mxu0 0
        %814 = vmatprep.subr.bf16.mxu0 0
        %815 = vmatpush1.bf16.xpose.msra.mxu0 0
        %816 = vmatprep.subr.bf16.mxu0 0
        %817 = vmatpush1.bf16.xpose.msra.mxu0 0
        %818 = vmatprep.subr.bf16.mxu0 0
        %819 = vmatpush1.bf16.xpose.msra.mxu0 0
        %820 = vmatprep.subr.bf16.mxu0 0
        %821 = vmatpush1.bf16.xpose.msra.mxu0 0
        %822 = vmatprep.subr.bf16.mxu0 0
        %823 = vmatpush1.bf16.xpose.msra.mxu0 0
        %824 = vmatprep.subr.bf16.mxu0 0
        %825 = vmatpush1.bf16.xpose.msra.mxu0 0
        %826 = vmatprep.subr.bf16.mxu0 0
        %827 = vmatpush1.bf16.xpose.msra.mxu0 0
        %828 = vmatprep.subr.bf16.mxu0 0
        %829 = vmatpush1.bf16.xpose.msra.mxu0 0
        %830 = vmatprep.subr.bf16.mxu0 0
        %831 = vmatpush1.bf16.xpose.msra.mxu0 0
        %832 = vmatprep.subr.bf16.mxu0 0
        %833 = vmatpush1.bf16.xpose.msra.mxu0 0
        %834 = vmatprep.subr.bf16.mxu0 0
        %835 = vmatpush1.bf16.xpose.msra.mxu0 0
        %836 = vmatprep.mubr.bf16.mxu0 0
        %837 = vmatmul.mubr.bf16.gmra.mrb[0].mxu0 %v799
        %v838 = vpop.f32.mrb[0].mxu0
        %v839 = vadd.f32 0.0, %v838
        %v840 = vpop.f32.mrb[0].mxu0
        %v841 = vpop.f32.mrb[0].mxu0
        %v842 = vpop.f32.mrb[0].mxu0
        %843 = vdwg.mxu0
        %844 = vrot.lane.b32.xlu0 %v355, 112
        %v845 = vpop.permute.xlu0 %844
        %846 = vrot.lane.b32.xlu0 %v355, 80
        %v847 = vpop.permute.xlu0 %846
        %v849 = vsel %vm358, %v845, 0
        %v852 = vsel %vm358, %v847, 0
        %854 = vmatprep.subr.bf16.mxu0 0
        %855 = vmatpush1.bf16.xpose.msra.mxu0 %v852
        %856 = vmatprep.subr.bf16.mxu0 0
        %857 = vmatpush1.bf16.xpose.msra.mxu0 0
        %858 = vmatprep.subr.bf16.mxu0 0
        %859 = vmatpush1.bf16.xpose.msra.mxu0 0
        %860 = vmatprep.subr.bf16.mxu0 0
        %861 = vmatpush1.bf16.xpose.msra.mxu0 0
        %862 = vmatprep.subr.bf16.mxu0 0
        %863 = vmatpush1.bf16.xpose.msra.mxu0 0
        %864 = vmatprep.subr.bf16.mxu0 0
        %865 = vmatpush1.bf16.xpose.msra.mxu0 0
        %866 = vmatprep.subr.bf16.mxu0 0
        %867 = vmatpush1.bf16.xpose.msra.mxu0 0
        %868 = vmatprep.subr.bf16.mxu0 0
        %869 = vmatpush1.bf16.xpose.msra.mxu0 0
        %870 = vmatprep.subr.bf16.mxu0 0
        %871 = vmatpush1.bf16.xpose.msra.mxu0 0
        %872 = vmatprep.subr.bf16.mxu0 0
        %873 = vmatpush1.bf16.xpose.msra.mxu0 0
        %874 = vmatprep.subr.bf16.mxu0 0
        %875 = vmatpush1.bf16.xpose.msra.mxu0 0
        %876 = vmatprep.subr.bf16.mxu0 0
        %877 = vmatpush1.bf16.xpose.msra.mxu0 0
        %878 = vmatprep.subr.bf16.mxu0 0
        %879 = vmatpush1.bf16.xpose.msra.mxu0 0
        %880 = vmatprep.subr.bf16.mxu0 0
        %881 = vmatpush1.bf16.xpose.msra.mxu0 0
        %882 = vmatprep.subr.bf16.mxu0 0
        %883 = vmatpush1.bf16.xpose.msra.mxu0 0
        %884 = vmatprep.subr.bf16.mxu0 0
        %885 = vmatpush1.bf16.xpose.msra.mxu0 0
        %886 = vmatprep.mubr.bf16.mxu0 0
        %887 = vmatmul.mubr.bf16.gmra.mrb[0].mxu0 %v849
        %v888 = vpop.f32.mrb[0].mxu0
        %v889 = vadd.f32 0.0, %v888
        %v890 = vpop.f32.mrb[0].mxu0
        %v891 = vpop.f32.mrb[0].mxu0
        %v892 = vpop.f32.mrb[0].mxu0
        %893 = vdwg.mxu0
        %v894 = vsel %vm358, %v839, -inf
        %895 = vmax.xlane.f32.xlu0 %v894
        %v896 = vpop.xlane.xlu0 %895
        %v897 = vsel %vm358, %v889, -inf
        %898 = vmax.xlane.f32.xlu0 %v897
        %v899 = vpop.xlane.xlu0 %898
        %v900 = vsub.f32 %v839, %v896
        %v901 = vsub.f32 %v889, %v899
        %v902 = vmul.f32 %v900, 1.442695
        %v903 = vpow.pop %v902
        %v904 = vmul.f32 %v901, 1.442695
        %v905 = vpow.pop %v904
        %v906 = vsel %vm358, %v903, 0.0
        %907 = vadd.xlane.f32.xlu0 %v906
        %v908 = vpop.xlane.xlu0 %907
        %v909 = vsel %vm358, %v905, 0.0
        %910 = vadd.xlane.f32.xlu0 %v909
        %v911 = vpop.xlane.xlu0 %910
        %v912 = vrcp.pop %v908
        %v913 = vrcp.pop %v911
        %v914 = vmul.f32 %v903, %v912
        %v915 = vmul.f32 %v905, %v913
        %v916 = vpack.c.bf16 %v914, %v914
        %v917 = vpack.c.bf16 %v915, %v915
        %918 = vrot.lane.b32.xlu0 %v354, 48
        %v919 = vpop.permute.xlu0 %918
        %v921 = vsel %vm358, %v916, 0
        %v924 = vsel %vm482, %v919, 0
        %926 = vmatprep.subr.bf16.mxu0 0
        %927 = vmatpush1.bf16.msra.mxu0 %v924
        %928 = vmatprep.subr.bf16.mxu0 0
        %929 = vmatpush1.bf16.msra.mxu0 0
        %930 = vmatprep.subr.bf16.mxu0 0
        %931 = vmatpush1.bf16.msra.mxu0 0
        %932 = vmatprep.subr.bf16.mxu0 0
        %933 = vmatpush1.bf16.msra.mxu0 0
        %934 = vmatprep.subr.bf16.mxu0 0
        %935 = vmatpush1.bf16.msra.mxu0 0
        %936 = vmatprep.subr.bf16.mxu0 0
        %937 = vmatpush1.bf16.msra.mxu0 0
        %938 = vmatprep.subr.bf16.mxu0 0
        %939 = vmatpush1.bf16.msra.mxu0 0
        %940 = vmatprep.subr.bf16.mxu0 0
        %941 = vmatpush1.bf16.msra.mxu0 0
        %942 = vmatprep.subr.bf16.mxu0 0
        %943 = vmatpush1.bf16.msra.mxu0 0
        %944 = vmatprep.subr.bf16.mxu0 0
        %945 = vmatpush1.bf16.msra.mxu0 0
        %946 = vmatprep.subr.bf16.mxu0 0
        %947 = vmatpush1.bf16.msra.mxu0 0
        %948 = vmatprep.subr.bf16.mxu0 0
        %949 = vmatpush1.bf16.msra.mxu0 0
        %950 = vmatprep.subr.bf16.mxu0 0
        %951 = vmatpush1.bf16.msra.mxu0 0
        %952 = vmatprep.subr.bf16.mxu0 0
        %953 = vmatpush1.bf16.msra.mxu0 0
        %954 = vmatprep.subr.bf16.mxu0 0
        %955 = vmatpush1.bf16.msra.mxu0 0
        %956 = vmatprep.subr.bf16.mxu0 0
        %957 = vmatpush1.bf16.msra.mxu0 0
        %958 = vmatprep.mubr.bf16.mxu0 0
        %959 = vmatmul.mubr.bf16.gmra.mrb[0].mxu0 %v921
        %v960 = vpop.f32.mrb[0].mxu0
        %v961 = vadd.f32 0.0, %v960
        %v962 = vpop.f32.mrb[0].mxu0
        %v963 = vpop.f32.mrb[0].mxu0
        %v964 = vpop.f32.mrb[0].mxu0
        %965 = vdwg.mxu0
        %966 = vrot.lane.b32.xlu0 %v355, 48
        %v967 = vpop.permute.xlu0 %966
        %v969 = vsel %vm358, %v917, 0
        %v972 = vsel %vm482, %v967, 0
        %974 = vmatprep.subr.bf16.mxu0 0
        %975 = vmatpush1.bf16.msra.mxu0 %v972
        %976 = vmatprep.subr.bf16.mxu0 0
        %977 = vmatpush1.bf16.msra.mxu0 0
        %978 = vmatprep.subr.bf16.mxu0 0
        %979 = vmatpush1.bf16.msra.mxu0 0
        %980 = vmatprep.subr.bf16.mxu0 0
        %981 = vmatpush1.bf16.msra.mxu0 0
        %982 = vmatprep.subr.bf16.mxu0 0
        %983 = vmatpush1.bf16.msra.mxu0 0
        %984 = vmatprep.subr.bf16.mxu0 0
        %985 = vmatpush1.bf16.msra.mxu0 0
        %986 = vmatprep.subr.bf16.mxu0 0
        %987 = vmatpush1.bf16.msra.mxu0 0
        %988 = vmatprep.subr.bf16.mxu0 0
        %989 = vmatpush1.bf16.msra.mxu0 0
        %990 = vmatprep.subr.bf16.mxu0 0
        %991 = vmatpush1.bf16.msra.mxu0 0
        %992 = vmatprep.subr.bf16.mxu0 0
        %993 = vmatpush1.bf16.msra.mxu0 0
        %994 = vmatprep.subr.bf16.mxu0 0
        %995 = vmatpush1.bf16.msra.mxu0 0
        %996 = vmatprep.subr.bf16.mxu0 0
        %997 = vmatpush1.bf16.msra.mxu0 0
        %998 = vmatprep.subr.bf16.mxu0 0
        %999 = vmatpush1.bf16.msra.mxu0 0
        %1000 = vmatprep.subr.bf16.mxu0 0
        %1001 = vmatpush1.bf16.msra.mxu0 0
        %1002 = vmatprep.subr.bf16.mxu0 0
        %1003 = vmatpush1.bf16.msra.mxu0 0
        %1004 = vmatprep.subr.bf16.mxu0 0
        %1005 = vmatpush1.bf16.msra.mxu0 0
        %1006 = vmatprep.mubr.bf16.mxu0 0
        %1007 = vmatmul.mubr.bf16.gmra.mrb[0].mxu0 %v969
        %v1008 = vpop.f32.mrb[0].mxu0
        %v1009 = vadd.f32 0.0, %v1008
        %v1010 = vpop.f32.mrb[0].mxu0
        %v1011 = vpop.f32.mrb[0].mxu0
        %v1012 = vpop.f32.mrb[0].mxu0
        %1013 = vdwg.mxu0
        %1014 = vrot.lane.b32.xlu0 %v354, 104
        %v1015 = vpop.permute.xlu0 %1014
        %1016 = vrot.lane.b32.xlu0 %v354, 72
        %v1017 = vpop.permute.xlu0 %1016
        %v1019 = vsel %vm358, %v1015, 0
        %v1022 = vsel %vm358, %v1017, 0
        %1024 = vmatprep.subr.bf16.mxu0 0
        %1025 = vmatpush1.bf16.xpose.msra.mxu0 %v1022
        %1026 = vmatprep.subr.bf16.mxu0 0
        %1027 = vmatpush1.bf16.xpose.msra.mxu0 0
        %1028 = vmatprep.subr.bf16.mxu0 0
        %1029 = vmatpush1.bf16.xpose.msra.mxu0 0
        %1030 = vmatprep.subr.bf16.mxu0 0
        %1031 = vmatpush1.bf16.xpose.msra.mxu0 0
        %1032 = vmatprep.subr.bf16.mxu0 0
        %1033 = vmatpush1.bf16.xpose.msra.mxu0 0
        %1034 = vmatprep.subr.bf16.mxu0 0
        %1035 = vmatpush1.bf16.xpose.msra.mxu0 0
        %1036 = vmatprep.subr.bf16.mxu0 0
        %1037 = vmatpush1.bf16.xpose.msra.mxu0 0
        %1038 = vmatprep.subr.bf16.mxu0 0
        %1039 = vmatpush1.bf16.xpose.msra.mxu0 0
        %1040 = vmatprep.subr.bf16.mxu0 0
        %1041 = vmatpush1.bf16.xpose.msra.mxu0 0
        %1042 = vmatprep.subr.bf16.mxu0 0
        %1043 = vmatpush1.bf16.xpose.msra.mxu0 0
        %1044 = vmatprep.subr.bf16.mxu0 0
        %1045 = vmatpush1.bf16.xpose.msra.mxu0 0
        %1046 = vmatprep.subr.bf16.mxu0 0
        %1047 = vmatpush1.bf16.xpose.msra.mxu0 0
        %1048 = vmatprep.subr.bf16.mxu0 0
        %1049 = vmatpush1.bf16.xpose.msra.mxu0 0
        %1050 = vmatprep.subr.bf16.mxu0 0
        %1051 = vmatpush1.bf16.xpose.msra.mxu0 0
        %1052 = vmatprep.subr.bf16.mxu0 0
        %1053 = vmatpush1.bf16.xpose.msra.mxu0 0
        %1054 = vmatprep.subr.bf16.mxu0 0
        %1055 = vmatpush1.bf16.xpose.msra.mxu0 0
        %1056 = vmatprep.mubr.bf16.mxu0 0
        %1057 = vmatmul.mubr.bf16.gmra.mrb[0].mxu0 %v1019
        %v1058 = vpop.f32.mrb[0].mxu0
        %v1059 = vadd.f32 0.0, %v1058
        %v1060 = vpop.f32.mrb[0].mxu0
        %v1061 = vpop.f32.mrb[0].mxu0
        %v1062 = vpop.f32.mrb[0].mxu0
        %1063 = vdwg.mxu0
        %1064 = vrot.lane.b32.xlu0 %v355, 104
        %v1065 = vpop.permute.xlu0 %1064
        %1066 = vrot.lane.b32.xlu0 %v355, 72
        %v1067 = vpop.permute.xlu0 %1066
        %v1069 = vsel %vm358, %v1065, 0
        %v1072 = vsel %vm358, %v1067, 0
        %1074 = vmatprep.subr.bf16.mxu0 0
        %1075 = vmatpush1.bf16.xpose.msra.mxu0 %v1072
        %1076 = vmatprep.subr.bf16.mxu0 0
        %1077 = vmatpush1.bf16.xpose.msra.mxu0 0
        %1078 = vmatprep.subr.bf16.mxu0 0
        %1079 = vmatpush1.bf16.xpose.msra.mxu0 0
        %1080 = vmatprep.subr.bf16.mxu0 0
        %1081 = vmatpush1.bf16.xpose.msra.mxu0 0
        %1082 = vmatprep.subr.bf16.mxu0 0
        %1083 = vmatpush1.bf16.xpose.msra.mxu0 0
        %1084 = vmatprep.subr.bf16.mxu0 0
        %1085 = vmatpush1.bf16.xpose.msra.mxu0 0
        %1086 = vmatprep.subr.bf16.mxu0 0
        %1087 = vmatpush1.bf16.xpose.msra.mxu0 0
        %1088 = vmatprep.subr.bf16.mxu0 0
        %1089 = vmatpush1.bf16.xpose.msra.mxu0 0
        %1090 = vmatprep.subr.bf16.mxu0 0
        %1091 = vmatpush1.bf16.xpose.msra.mxu0 0
        %1092 = vmatprep.subr.bf16.mxu0 0
        %1093 = vmatpush1.bf16.xpose.msra.mxu0 0
        %1094 = vmatprep.subr.bf16.mxu0 0
        %1095 = vmatpush1.bf16.xpose.msra.mxu0 0
        %1096 = vmatprep.subr.bf16.mxu0 0
        %1097 = vmatpush1.bf16.xpose.msra.mxu0 0
        %1098 = vmatprep.subr.bf16.mxu0 0
        %1099 = vmatpush1.bf16.xpose.msra.mxu0 0
        %1100 = vmatprep.subr.bf16.mxu0 0
        %1101 = vmatpush1.bf16.xpose.msra.mxu0 0
        %1102 = vmatprep.subr.bf16.mxu0 0
        %1103 = vmatpush1.bf16.xpose.msra.mxu0 0
        %1104 = vmatprep.subr.bf16.mxu0 0
        %1105 = vmatpush1.bf16.xpose.msra.mxu0 0
        %1106 = vmatprep.mubr.bf16.mxu0 0
        %1107 = vmatmul.mubr.bf16.gmra.mrb[0].mxu0 %v1069
        %v1108 = vpop.f32.mrb[0].mxu0
        %v1109 = vadd.f32 0.0, %v1108
        %v1110 = vpop.f32.mrb[0].mxu0
        %v1111 = vpop.f32.mrb[0].mxu0
        %v1112 = vpop.f32.mrb[0].mxu0
        %1113 = vdwg.mxu0
        %v1114 = vsel %vm358, %v1059, -inf
        %1115 = vmax.xlane.f32.xlu0 %v1114
        %v1116 = vpop.xlane.xlu0 %1115
        %v1117 = vsel %vm358, %v1109, -inf
        %1118 = vmax.xlane.f32.xlu0 %v1117
        %v1119 = vpop.xlane.xlu0 %1118
        %v1120 = vsub.f32 %v1059, %v1116
        %v1121 = vsub.f32 %v1109, %v1119
        %v1122 = vmul.f32 %v1120, 1.442695
        %v1123 = vpow.pop %v1122
        %v1124 = vmul.f32 %v1121, 1.442695
        %v1125 = vpow.pop %v1124
        %v1126 = vsel %vm358, %v1123, 0.0
        %1127 = vadd.xlane.f32.xlu0 %v1126
        %v1128 = vpop.xlane.xlu0 %1127
        %v1129 = vsel %vm358, %v1125, 0.0
        %1130 = vadd.xlane.f32.xlu0 %v1129
        %v1131 = vpop.xlane.xlu0 %1130
        %v1132 = vrcp.pop %v1128
        %v1133 = vrcp.pop %v1131
        %v1134 = vmul.f32 %v1123, %v1132
        %v1135 = vmul.f32 %v1125, %v1133
        %v1136 = vpack.c.bf16 %v1134, %v1134
        %v1137 = vpack.c.bf16 %v1135, %v1135
        %1138 = vrot.lane.b32.xlu0 %v354, 40
        %v1139 = vpop.permute.xlu0 %1138
        %v1141 = vsel %vm358, %v1136, 0
        %v1144 = vsel %vm482, %v1139, 0
        %1146 = vmatprep.subr.bf16.mxu0 0
        %1147 = vmatpush1.bf16.msra.mxu0 %v1144
        %1148 = vmatprep.subr.bf16.mxu0 0
        %1149 = vmatpush1.bf16.msra.mxu0 0
        %1150 = vmatprep.subr.bf16.mxu0 0
        %1151 = vmatpush1.bf16.msra.mxu0 0
        %1152 = vmatprep.subr.bf16.mxu0 0
        %1153 = vmatpush1.bf16.msra.mxu0 0
        %1154 = vmatprep.subr.bf16.mxu0 0
        %1155 = vmatpush1.bf16.msra.mxu0 0
        %1156 = vmatprep.subr.bf16.mxu0 0
        %1157 = vmatpush1.bf16.msra.mxu0 0
        %1158 = vmatprep.subr.bf16.mxu0 0
        %1159 = vmatpush1.bf16.msra.mxu0 0
        %1160 = vmatprep.subr.bf16.mxu0 0
        %1161 = vmatpush1.bf16.msra.mxu0 0
        %1162 = vmatprep.subr.bf16.mxu0 0
        %1163 = vmatpush1.bf16.msra.mxu0 0
        %1164 = vmatprep.subr.bf16.mxu0 0
        %1165 = vmatpush1.bf16.msra.mxu0 0
        %1166 = vmatprep.subr.bf16.mxu0 0
        %1167 = vmatpush1.bf16.msra.mxu0 0
        %1168 = vmatprep.subr.bf16.mxu0 0
        %1169 = vmatpush1.bf16.msra.mxu0 0
        %1170 = vmatprep.subr.bf16.mxu0 0
        %1171 = vmatpush1.bf16.msra.mxu0 0
        %1172 = vmatprep.subr.bf16.mxu0 0
        %1173 = vmatpush1.bf16.msra.mxu0 0
        %1174 = vmatprep.subr.bf16.mxu0 0
        %1175 = vmatpush1.bf16.msra.mxu0 0
        %1176 = vmatprep.subr.bf16.mxu0 0
        %1177 = vmatpush1.bf16.msra.mxu0 0
        %1178 = vmatprep.mubr.bf16.mxu0 0
        %1179 = vmatmul.mubr.bf16.gmra.mrb[0].mxu0 %v1141
        %v1180 = vpop.f32.mrb[0].mxu0
        %v1181 = vadd.f32 0.0, %v1180
        %v1182 = vpop.f32.mrb[0].mxu0
        %v1183 = vpop.f32.mrb[0].mxu0
        %v1184 = vpop.f32.mrb[0].mxu0
        %1185 = vdwg.mxu0
        %1186 = vrot.lane.b32.xlu0 %v355, 40
        %v1187 = vpop.permute.xlu0 %1186
        %v1189 = vsel %vm358, %v1137, 0
        %v1192 = vsel %vm482, %v1187, 0
        %1194 = vmatprep.subr.bf16.mxu0 0
        %1195 = vmatpush1.bf16.msra.mxu0 %v1192
        %1196 = vmatprep.subr.bf16.mxu0 0
        %1197 = vmatpush1.bf16.msra.mxu0 0
        %1198 = vmatprep.subr.bf16.mxu0 0
        %1199 = vmatpush1.bf16.msra.mxu0 0
        %1200 = vmatprep.subr.bf16.mxu0 0
        %1201 = vmatpush1.bf16.msra.mxu0 0
        %1202 = vmatprep.subr.bf16.mxu0 0
        %1203 = vmatpush1.bf16.msra.mxu0 0
        %1204 = vmatprep.subr.bf16.mxu0 0
        %1205 = vmatpush1.bf16.msra.mxu0 0
        %1206 = vmatprep.subr.bf16.mxu0 0
        %1207 = vmatpush1.bf16.msra.mxu0 0
        %1208 = vmatprep.subr.bf16.mxu0 0
        %1209 = vmatpush1.bf16.msra.mxu0 0
        %1210 = vmatprep.subr.bf16.mxu0 0
        %1211 = vmatpush1.bf16.msra.mxu0 0
        %1212 = vmatprep.subr.bf16.mxu0 0
        %1213 = vmatpush1.bf16.msra.mxu0 0
        %1214 = vmatprep.subr.bf16.mxu0 0
        %1215 = vmatpush1.bf16.msra.mxu0 0
        %1216 = vmatprep.subr.bf16.mxu0 0
        %1217 = vmatpush1.bf16.msra.mxu0 0
        %1218 = vmatprep.subr.bf16.mxu0 0
        %1219 = vmatpush1.bf16.msra.mxu0 0
        %1220 = vmatprep.subr.bf16.mxu0 0
        %1221 = vmatpush1.bf16.msra.mxu0 0
        %1222 = vmatprep.subr.bf16.mxu0 0
        %1223 = vmatpush1.bf16.msra.mxu0 0
        %1224 = vmatprep.subr.bf16.mxu0 0
        %1225 = vmatpush1.bf16.msra.mxu0 0
        %1226 = vmatprep.mubr.bf16.mxu0 0
        %1227 = vmatmul.mubr.bf16.gmra.mrb[0].mxu0 %v1189
        %v1228 = vpop.f32.mrb[0].mxu0
        %v1229 = vadd.f32 0.0, %v1228
        %v1230 = vpop.f32.mrb[0].mxu0
        %v1231 = vpop.f32.mrb[0].mxu0
        %v1232 = vpop.f32.mrb[0].mxu0
        %1233 = vdwg.mxu0
        %1236 = vrot.lane.b32.xlu0 %v741, 8
        %v1237 = vpop.permute.xlu0 %1236
        %1238 = vrot.lane.b32.xlu0 %v789, 8
        %v1239 = vpop.permute.xlu0 %1238
        %1244 = vrot.lane.b32.xlu0 %v961, 16
        %v1245 = vpop.permute.xlu0 %1244
        %1246 = vrot.lane.b32.xlu0 %v1009, 16
        %v1247 = vpop.permute.xlu0 %1246
        %1252 = vrot.lane.b32.xlu0 %v1181, 24
        %v1253 = vpop.permute.xlu0 %1252
        %1254 = vrot.lane.b32.xlu0 %v1229, 24
        %v1255 = vpop.permute.xlu0 %1254
        %v1258 = vsel %vm358, %v521, %v1237
        %v1259 = vsel %vm358, %v569, %v1239
        %vm1260 = vcmask 130048
        %v1261 = vsel %vm1260, %v1258, %v1245
        %v1262 = vsel %vm1260, %v1259, %v1247
        %vm1263 = vcmask 195584
        %v1264 = vsel %vm1263, %v1261, %v1253
        %v1265 = vsel %vm1263, %v1262, %v1255
        %v1266 = vpack.c.bf16 %v1265, %v1264
        %v1267 = vld [vmem:[#allocation7] sm:$0xf]
        %v1268 = vld [vmem:[#allocation7 + $0x4] sm:$0xf]
        %v1269 = vld [vmem:[#allocation7 + $0x8] sm:$0xf]
        %v1270 = vld [vmem:[#allocation7 + $0xc] sm:$0xf]
        %v1271 = vld [vmem:[%s4] sm:$0x1]
        %v1273 = vlaneseq
        %v1274 = vshrl.u32 %v1273, 7
        %v1275 = vsub.s32 0, %v1274
        %v1276 = vrot.slane %v1271, %v1275
        %v1282 = vunpack.c.l.b16 %v1267
        %v1283 = vunpack.c.l.b16 %v1268
        %v1284 = vunpack.c.l.b16 %v1269
        %v1285 = vunpack.c.l.b16 %v1270
        %v1286 = vpack.c.b16 %v1283, %v1282
        %v1287 = vpack.c.b16 %v1285, %v1284
        %v1291 = vsel %vm305, %v1266, 0
        %1293 = vmatprep.subr.bf16.mxu0 0
        %1294 = vmatpush1.bf16.msra.mxu0 %v1286
        %1295 = vmatprep.subr.bf16.mxu0 0
        %1296 = vmatpush1.bf16.msra.mxu0 %v1287
        %1297 = vmatprep.subr.bf16.mxu0 0
        %1298 = vmatpush1.bf16.msra.mxu0 0
        %1299 = vmatprep.subr.bf16.mxu0 0
        %1300 = vmatpush1.bf16.msra.mxu0 0
        %1301 = vmatprep.subr.bf16.mxu0 0
        %1302 = vmatpush1.bf16.msra.mxu0 0
        %1303 = vmatprep.subr.bf16.mxu0 0
        %1304 = vmatpush1.bf16.msra.mxu0 0
        %1305 = vmatprep.subr.bf16.mxu0 0
        %1306 = vmatpush1.bf16.msra.mxu0 0
        %1307 = vmatprep.subr.bf16.mxu0 0
        %1308 = vmatpush1.bf16.msra.mxu0 0
        %1309 = vmatprep.subr.bf16.mxu0 0
        %1310 = vmatpush1.bf16.msra.mxu0 0
        %1311 = vmatprep.subr.bf16.mxu0 0
        %1312 = vmatpush1.bf16.msra.mxu0 0
        %1313 = vmatprep.subr.bf16.mxu0 0
        %1314 = vmatpush1.bf16.msra.mxu0 0
        %1315 = vmatprep.subr.bf16.mxu0 0
        %1316 = vmatpush1.bf16.msra.mxu0 0
        %1317 = vmatprep.subr.bf16.mxu0 0
        %1318 = vmatpush1.bf16.msra.mxu0 0
        %1319 = vmatprep.subr.bf16.mxu0 0
        %1320 = vmatpush1.bf16.msra.mxu0 0
        %1321 = vmatprep.subr.bf16.mxu0 0
        %1322 = vmatpush1.bf16.msra.mxu0 0
        %1323 = vmatprep.subr.bf16.mxu0 0
        %1324 = vmatpush1.bf16.msra.mxu0 0
        %1325 = vmatprep.mubr.bf16.mxu0 0
        %1326 = vmatmul.mubr.bf16.gmra.mrb[0].mxu0 %v1291
        %v1327 = vpop.f32.mrb[0].mxu0
        %v1328 = vadd.f32 %v1276, %v1327
        %v1329 = vpop.f32.mrb[0].mxu0
        %v1330 = vpop.f32.mrb[0].mxu0
        %v1331 = vadd.f32 %v1276, %v1330
        %v1332 = vpop.f32.mrb[0].mxu0
        %1333 = vdwg.mxu0
        %v1334 = vpack.c.bf16 %v1331, %v1328
        %v1336 = vunpack.c.l.b16 %v1334
        %v1337 = vunpack.c.h.b16 %v1334
        %v1338 = vpack.c.b16 %v1336, %v1336
        %v1339 = vpack.c.b16 %v1337, %v1337
        %1342 = vst [vmem:[%s271] sm:$0xf] %v1338
        %1343 = vst [vmem:[%s271 + $0x4] sm:$0xf] %v1339
        %s1344 = sand.u32 %s141, 1
        %s1345 = scalar_lea.sflag [#allocation4], %s1344
        %s1346 = sand.u32 %s141, 1
        %s1347 = smul.addr %s1346, 8
        %s1348 = scalar_lea.vmem [#allocation8], %s1347
        // Predicated region
        $region53: #{tpu_custom_call.1} parent=39 // pred_check
          %p1349 = pneg %p151
        $region54: #{tpu_custom_call.1} parent=39 // pred_check_branch
          %1351 = sbr.rel (%p1349) target = $region56
        $region55: #{tpu_custom_call.1} parent=39 // pred_region
          %s1352 = smul.u32 2, %s23
          %s1354 = ssub.s32 128, 128
          %1355 = vsyncadd %s1345, %s1354
          %s1356 = smul.addr %s1352, 64
          %s1357 = scalar_lea.hbm %s5, %s1356
          %s1358 = sshll.u32 %s1348, 4
          %s1359 = int_to_ptr.vmem [resolvable:$true] %s1358
          %1364 = dma.vmem_to_hbm [thread:$0]  %s1359, 128, %s1357, %s1345, 64, 64, 4
        $region56: #{tpu_custom_call.1} parent=39 // pred_fallthru
          _
      $region40: #{tpu_custom_call.1} parent=5 // pred_fallthru
        _
      %p1365 = scmp.le.s32.totalorder 2, %s18
      // Predicated region
      $region57: #{tpu_custom_call.1} parent=5 // pred_check
        %p1366 = pneg %p1365
      $region58: #{tpu_custom_call.1} parent=5 // pred_check_branch
        %1368 = sbr.rel (%p1366) target = $region60
      $region59: #{tpu_custom_call.1} parent=5 // pred_region
        %s1369 = ssub.s32 %s18, 2
        // Predicated region
        $region61: #{tpu_custom_call.1} parent=59 // pred_check
          %p1370 = pneg %p157
        $region62: #{tpu_custom_call.1} parent=59 // pred_check_branch
          %1372 = sbr.rel (%p1370) target = $region64
        $region63: #{tpu_custom_call.1} parent=59 // pred_region
          %s1373 = sand.u32 %s142, 1
          %s1374 = scalar_lea.sflag [#allocation4], %s1373
          %s1375 = sand.u32 %s142, 1
          %s1376 = smul.addr %s1375, 8
          %s1377 = scalar_lea.vmem [#allocation8], %s1376
          %1378 = dma.done %s1374, 128
        $region64: #{tpu_custom_call.1} parent=59 // pred_fallthru
          _
      $region60: #{tpu_custom_call.1} parent=5 // pred_fallthru
        _
    $region6: #{tpu_custom_call.1} parent=1 // loop_footer
      %s22 = sadd.s32 1, %s18
    $region7: #{tpu_custom_call.1} parent=1 // loop_footer_branch
      %17 = sbr.rel target = $region3
    $region8: #{tpu_custom_call.1} parent=1 // loop_exit
      _
    %1379 = vsyncpa [#allocation3], 1
    %s1380 = scalar_lea.sflag [#allocation3], 1
    %1381 = vsyncpa %s1380, 1
    %1382 = vsyncpa [#allocation6], 1
    %1383 = vsyncpa [#allocation4], 1
    %s1384 = scalar_lea.sflag [#allocation4], 1
    %1385 = vsyncpa %s1384, 1

</llo_original>
